<compile_context>
chip_gen: v5e
topology: v5e:2x2
jax: 0.10.0
libtpu: 0.0.40
codegen_flags: <defaults>
</compile_context>

<pallas_src>
import functools
import math

import jax
import jax.numpy as jnp
from jax.experimental import pallas as pl
from jax.experimental.pallas import tpu as pltpu

LN_EPS = 1e-5          # nn.LayerNorm default
LEAKY_SLOPE = 0.01     # nn.LeakyReLU default


# ---------------------------------------------------------------------------
# Fused Block kernel: one grid step = one block of batch elements (folded into
# the matmul M dimension); everything stays in VMEM / vregs.
# ---------------------------------------------------------------------------
def _block_kernel(
    # folded activations: (Bblk*T, E) / (Bblk*S, E)
    tgt_ref, mem_ref, pet_ref, pem_ref,
    # packed params
    ln_ref,        # (6, E): ln1_g, ln1_b, ln2_g, ln2_b, ln3_g, ln3_b
    ab_ref,        # (8, E): sa_bq, sa_bk, sa_bv, sa_bo, ca_bq, ca_bk, ca_bv, ca_bo
    # self-attention weights (bf16)
    sa_wqk_ref, sa_wv_ref, sa_wo_ref,
    # cross-attention weights (bf16)
    ca_wq_ref, ca_wk_ref, ca_wv_ref, ca_wo_ref,
    # ffn
    w1_ref, b1_ref, w2_ref, b2_ref,
    # output
    o_ref,
    *, num_heads, bblk, tgt_len, mem_len,
):
    f32, bf16 = jnp.float32, jnp.bfloat16
    E = tgt_ref.shape[-1]
    Dh = E // num_heads
    scale = 1.0 / math.sqrt(Dh)
    Mt = bblk * tgt_len

    tgt = tgt_ref[...]       # (Mt, E) f32
    memv = mem_ref[...]      # (Ms, E) f32
    pet = pet_ref[...]
    pem = pem_ref[...]

    def ln(x, idx):
        g = ln_ref[2 * idx:2 * idx + 1, :]
        b = ln_ref[2 * idx + 1:2 * idx + 2, :]
        mu = jnp.mean(x, axis=-1, keepdims=True)
        var = jnp.mean((x - mu) ** 2, axis=-1, keepdims=True)
        return (x - mu) * jax.lax.rsqrt(var + LN_EPS) * g + b

    def softmax_last(s):
        m = jnp.max(s, axis=-1, keepdims=True)
        p = jnp.exp(s - m)
        denom = jnp.sum(p, axis=-1, keepdims=True)
        r = pl.reciprocal(denom, approx=True)   # EUP slot
        r = r * (2.0 - denom * r)               # one Newton step -> ~exact f32
        return p * r

    def mha(q, k, v, wo_ref, bo, klen):
        # q: (Mt, E) f32; k, v: (bblk*klen, E) f32.
        # Scores / P*V are batched over the batch block via 3-D einsum; the
        # per-head context never leaves values: it is folded straight into the
        # output projection (accumulated over heads).
        q3 = (q * scale).reshape(bblk, tgt_len, E).astype(bf16)
        k3 = k.reshape(bblk, klen, E).astype(bf16)
        v3 = v.reshape(bblk, klen, E).astype(bf16)
        out = jnp.zeros((Mt, E), f32)
        for h in range(num_heads):
            lo = h * Dh
            s = jnp.einsum('bqd,bkd->bqk',
                           q3[:, :, lo:lo + Dh], k3[:, :, lo:lo + Dh],
                           preferred_element_type=f32)            # (bblk, T, klen)
            p = softmax_last(s).astype(bf16)
            ctx = jnp.einsum('bqk,bkd->bqd', p, v3[:, :, lo:lo + Dh],
                             preferred_element_type=f32)          # (bblk, T, Dh)
            out = out + jnp.dot(ctx.reshape(Mt, Dh).astype(bf16),
                                wo_ref[lo:lo + Dh, :],
                                preferred_element_type=f32)
        return out + bo

    # ----- self-attention (residual is norm1(tgt), exactly as in the module) -----
    x = ln(tgt, 0)
    xq16 = (x + pet).astype(bf16)
    qk = jnp.dot(xq16, sa_wqk_ref[...], preferred_element_type=f32)   # (Mt, 2E) fused Q/K
    q = qk[:, :E] + ab_ref[0:1, :]
    k = qk[:, E:] + ab_ref[1:2, :]
    v = jnp.dot(x.astype(bf16), sa_wv_ref[...],
                preferred_element_type=f32) + ab_ref[2:3, :]
    x = x + mha(q, k, v, sa_wo_ref, ab_ref[3:4, :], tgt_len)

    # ----- cross-attention -----
    x2 = ln(x, 1)
    q = jnp.dot((x2 + pet).astype(bf16), ca_wq_ref[...],
                preferred_element_type=f32) + ab_ref[4:5, :]
    k = jnp.dot((memv + pem).astype(bf16), ca_wk_ref[...],
                preferred_element_type=f32) + ab_ref[5:6, :]
    v = jnp.dot(memv.astype(bf16), ca_wv_ref[...],
                preferred_element_type=f32) + ab_ref[6:7, :]
    x = x + mha(q, k, v, ca_wo_ref, ab_ref[7:8, :], mem_len)

    # ----- FFN -----
    x2 = ln(x, 2)
    h = jnp.dot(x2.astype(bf16), w1_ref[...],
                preferred_element_type=f32) + b1_ref[...]
    h = jnp.where(h >= 0, h, LEAKY_SLOPE * h)
    x = x + jnp.dot(h.astype(bf16), w2_ref[...],
                    preferred_element_type=f32) + b2_ref[...]

    o_ref[...] = x.astype(o_ref.dtype)


# ---------------------------------------------------------------------------
# Wrapper: folds batch into matmul rows, packs params, issues ONE pallas_call.
# ---------------------------------------------------------------------------
def block_forward(params, tgt, mem, pe_tgt=None, pe_mem=None, num_heads=4):
    B, T, E = tgt.shape
    S = mem.shape[1]
    f32, bf16 = jnp.float32, jnp.bfloat16

    pe_tgt = jnp.zeros_like(tgt) if pe_tgt is None else jnp.broadcast_to(pe_tgt, tgt.shape)
    pe_mem = jnp.zeros_like(mem) if pe_mem is None else jnp.broadcast_to(pe_mem, mem.shape)

    # Fold batch into rows (exact for position-wise projections / LN / FFN).
    tgt2 = tgt.reshape(B * T, E)
    mem2 = mem.reshape(B * S, E)
    pet2 = pe_tgt.reshape(B * T, E)
    pem2 = pe_mem.reshape(B * S, E)

    # Batch block: large enough to fill MXU rows (>=256) while dividing B.
    bblk = max(1, min(B, -(-256 // T)))
    while B % bblk:
        bblk -= 1
    nb = B // bblk
    Mt, Ms = bblk * T, bblk * S

    sa, ca = params["sa"], params["ca"]

    # Packed small params.
    ln_slab = jnp.stack([params["ln1_g"], params["ln1_b"],
                         params["ln2_g"], params["ln2_b"],
                         params["ln3_g"], params["ln3_b"]], axis=0).astype(f32)   # (6, E)
    attn_bias = jnp.stack([sa["in_b"][:E], sa["in_b"][E:2 * E], sa["in_b"][2 * E:],
                           sa["out_b"],
                           ca["in_b"][:E], ca["in_b"][E:2 * E], ca["in_b"][2 * E:],
                           ca["out_b"]], axis=0).astype(f32)                       # (8, E)

    # Weights as bf16 MXU operands (f32 accumulation in-kernel).
    sa_wqk = sa["in_w"][:2 * E].T.astype(bf16)        # (E, 2E) fused Q/K
    sa_wv = sa["in_w"][2 * E:].T.astype(bf16)
    sa_wo = sa["out_w"].T.astype(bf16)
    ca_wq = ca["in_w"][:E].T.astype(bf16)
    ca_wk = ca["in_w"][E:2 * E].T.astype(bf16)
    ca_wv = ca["in_w"][2 * E:].T.astype(bf16)
    ca_wo = ca["out_w"].T.astype(bf16)
    w1 = params["ffn_w1"].T.astype(bf16)              # (E, hidden)
    b1 = params["ffn_b1"].reshape(1, -1).astype(f32)
    w2 = params["ffn_w2"].T.astype(bf16)              # (hidden, E)
    b2 = params["ffn_b2"].reshape(1, -1).astype(f32)

    inputs = [tgt2, mem2, pet2, pem2, ln_slab, attn_bias,
              sa_wqk, sa_wv, sa_wo, ca_wq, ca_wk, ca_wv, ca_wo,
              w1, b1, w2, b2]

    act_specs = [
        pl.BlockSpec((Mt, E), lambda b: (b, 0)),
        pl.BlockSpec((Ms, E), lambda b: (b, 0)),
        pl.BlockSpec((Mt, E), lambda b: (b, 0)),
        pl.BlockSpec((Ms, E), lambda b: (b, 0)),
    ]
    weight_specs = [pl.BlockSpec(t.shape, lambda b: (0, 0)) for t in inputs[4:]]

    kernel = functools.partial(_block_kernel, num_heads=num_heads, bblk=bblk,
                               tgt_len=T, mem_len=S)

    out2 = pl.pallas_call(
        kernel,
        out_shape=jax.ShapeDtypeStruct((B * T, E), tgt.dtype),
        grid=(nb,),
        in_specs=act_specs + weight_specs,
        out_specs=pl.BlockSpec((Mt, E), lambda b: (b, 0)),
        compiler_params=pltpu.CompilerParams(
            dimension_semantics=("parallel",),          # batch blocks across TCs
            vmem_limit_bytes=32 * 1024 * 1024),
    )(*inputs)
    return out2.reshape(B, T, E)


# ---------------------------------------------------------------------------
# pure-JAX f32 reference (for correctness check)
# ---------------------------------------------------------------------------
def _ref_ln(x, g, b):
    mu = jnp.mean(x, -1, keepdims=True)
    var = jnp.mean((x - mu) ** 2, -1, keepdims=True)
    return (x - mu) * jax.lax.rsqrt(var + LN_EPS) * g + b


def _ref_mha(q_in, k_in, v_in, p, H, res):
    B, T, E = q_in.shape
    S = k_in.shape[1]
    Dh = E // H
    wq, wk, wv = p["in_w"][:E], p["in_w"][E:2 * E], p["in_w"][2 * E:]
    bq, bk, bv = p["in_b"][:E], p["in_b"][E:2 * E], p["in_b"][2 * E:]
    q = (q_in @ wq.T + bq).reshape(B, T, H, Dh).transpose(0, 2, 1, 3)
    k = (k_in @ wk.T + bk).reshape(B, S, H, Dh).transpose(0, 2, 1, 3)
    v = (v_in @ wv.T + bv).reshape(B, S, H, Dh).transpose(0, 2, 1, 3)
    s = jnp.einsum("bhtd,bhsd->bhts", q, k) / math.sqrt(Dh)
    a = jax.nn.softmax(s, axis=-1)
    ctx = jnp.einsum("bhts,bhsd->bhtd", a, v).transpose(0, 2, 1, 3).reshape(B, T, E)
    return res + ctx @ p["out_w"].T + p["out_b"]


def block_reference(params, tgt, mem, pe_tgt, pe_mem, num_heads=4):
    x = _ref_ln(tgt, params["ln1_g"], params["ln1_b"])
    x = _ref_mha(x + pe_tgt, x + pe_tgt, x, params["sa"], num_heads, x)
    x2 = _ref_ln(x, params["ln2_g"], params["ln2_b"])
    x = _ref_mha(x2 + pe_tgt, mem + pe_mem, mem, params["ca"], num_heads, x)
    x2 = _ref_ln(x, params["ln3_g"], params["ln3_b"])
    h = x2 @ params["ffn_w1"].T + params["ffn_b1"]
    h = jnp.where(h >= 0, h, LEAKY_SLOPE * h)
    return x + h @ params["ffn_w2"].T + params["ffn_b2"]


def init_params(key, embed_dim, mlp_ratio, num_heads):
    E = embed_dim
    Hd = int(mlp_ratio * E)
    ks = jax.random.split(key, 12)

    def w(k, shape, scale=0.05):
        return (scale * jax.random.normal(k, shape)).astype(jnp.float32)

    return {
        "ln1_g": jnp.ones((E,), jnp.float32), "ln1_b": jnp.zeros((E,), jnp.float32),
        "ln2_g": jnp.ones((E,), jnp.float32), "ln2_b": jnp.zeros((E,), jnp.float32),
        "ln3_g": jnp.ones((E,), jnp.float32), "ln3_b": jnp.zeros((E,), jnp.float32),
        "sa": {"in_w": w(ks[0], (3 * E, E)), "in_b": w(ks[1], (3 * E,)),
               "out_w": w(ks[2], (E, E)), "out_b": w(ks[3], (E,))},
        "ca": {"in_w": w(ks[4], (3 * E, E)), "in_b": w(ks[5], (3 * E,)),
               "out_w": w(ks[6], (E, E)), "out_b": w(ks[7], (E,))},
        "ffn_w1": w(ks[8], (Hd, E)), "ffn_b1": w(ks[9], (Hd,)),
        "ffn_w2": w(ks[10], (E, Hd)), "ffn_b2": w(ks[11], (E,)),
    }


if __name__ == "__main__":
    B, T, S = 2, 8, 16          # batch, tgt seq, mem seq
    E, HEADS, MLP_RATIO = 32, 4, 4

    key = jax.random.PRNGKey(0)
    k_tgt, k_mem, k_pt, k_pm, k_par = jax.random.split(key, 5)
    tgt = jax.random.normal(k_tgt, (B, T, E), jnp.float32)
    mem = jax.random.normal(k_mem, (B, S, E), jnp.float32)
    pe_tgt = 0.1 * jax.random.normal(k_pt, (B, T, E), jnp.float32)
    pe_mem = 0.1 * jax.random.normal(k_pm, (B, S, E), jnp.float32)

    params = init_params(k_par, E, MLP_RATIO, HEADS)

    out = block_forward(params, tgt, mem, pe_tgt, pe_mem, num_heads=HEADS)
    out = jax.block_until_ready(out)

    ref = block_reference(params, tgt, mem, pe_tgt, pe_mem, num_heads=HEADS)
    assert out.shape == (B, T, E)
    err = float(jnp.max(jnp.abs(out - ref)))
    # bf16 MXU operands with f32 accumulation -> slightly looser tolerance.
    assert jnp.allclose(out, ref, atol=1e-2, rtol=1e-2), err

    print("KERNEL_OK")
</pallas_src>

<mosaic_0001>
module attributes {stable_mosaic.version = 11 : i64} {
  func.func @_block_kernel(%arg0: i32, %arg1: memref<16x32xf32, #tpu.memory_space<vmem>>, %arg2: memref<32x32xf32, #tpu.memory_space<vmem>>, %arg3: memref<16x32xf32, #tpu.memory_space<vmem>>, %arg4: memref<32x32xf32, #tpu.memory_space<vmem>>, %arg5: memref<6x32xf32, #tpu.memory_space<vmem>>, %arg6: memref<8x32xf32, #tpu.memory_space<vmem>>, %arg7: memref<32x64xbf16, #tpu.memory_space<vmem>>, %arg8: memref<32x32xbf16, #tpu.memory_space<vmem>>, %arg9: memref<32x32xbf16, #tpu.memory_space<vmem>>, %arg10: memref<32x32xbf16, #tpu.memory_space<vmem>>, %arg11: memref<32x32xbf16, #tpu.memory_space<vmem>>, %arg12: memref<32x32xbf16, #tpu.memory_space<vmem>>, %arg13: memref<32x32xbf16, #tpu.memory_space<vmem>>, %arg14: memref<32x128xbf16, #tpu.memory_space<vmem>>, %arg15: memref<1x128xf32, #tpu.memory_space<vmem>>, %arg16: memref<128x32xbf16, #tpu.memory_space<vmem>>, %arg17: memref<1x32xf32, #tpu.memory_space<vmem>>, %arg18: memref<16x32xf32, #tpu.memory_space<vmem>>) attributes {dimension_semantics = [#tpu.dimension_semantics<parallel>], iteration_bounds = array<i64: 1>, scalar_prefetch = 0 : i64, scratch_operands = 0 : i64, tpu.core_type = #tpu.core_type<tc>, window_params = [{transform_indices = @transform_0, window_bounds = array<i64: 16, 32>}, {transform_indices = @transform_1, window_bounds = array<i64: 32, 32>}, {transform_indices = @transform_2, window_bounds = array<i64: 16, 32>}, {transform_indices = @transform_3, window_bounds = array<i64: 32, 32>}, {pipeline_mode = #tpu.pipeline_mode<synchronous>, transform_indices = @transform_4, window_bounds = array<i64: 6, 32>}, {pipeline_mode = #tpu.pipeline_mode<synchronous>, transform_indices = @transform_5, window_bounds = array<i64: 8, 32>}, {pipeline_mode = #tpu.pipeline_mode<synchronous>, transform_indices = @transform_6, window_bounds = array<i64: 32, 64>}, {pipeline_mode = #tpu.pipeline_mode<synchronous>, transform_indices = @transform_7, window_bounds = array<i64: 32, 32>}, {pipeline_mode = #tpu.pipeline_mode<synchronous>, transform_indices = @transform_8, window_bounds = array<i64: 32, 32>}, {pipeline_mode = #tpu.pipeline_mode<synchronous>, transform_indices = @transform_9, window_bounds = array<i64: 32, 32>}, {pipeline_mode = #tpu.pipeline_mode<synchronous>, transform_indices = @transform_10, window_bounds = array<i64: 32, 32>}, {pipeline_mode = #tpu.pipeline_mode<synchronous>, transform_indices = @transform_11, window_bounds = array<i64: 32, 32>}, {pipeline_mode = #tpu.pipeline_mode<synchronous>, transform_indices = @transform_12, window_bounds = array<i64: 32, 32>}, {pipeline_mode = #tpu.pipeline_mode<synchronous>, transform_indices = @transform_13, window_bounds = array<i64: 32, 128>}, {pipeline_mode = #tpu.pipeline_mode<synchronous>, transform_indices = @transform_14, window_bounds = array<i64: 1, 128>}, {pipeline_mode = #tpu.pipeline_mode<synchronous>, transform_indices = @transform_15, window_bounds = array<i64: 128, 32>}, {pipeline_mode = #tpu.pipeline_mode<synchronous>, transform_indices = @transform_16, window_bounds = array<i64: 1, 32>}, {transform_indices = @transform_17, window_bounds = array<i64: 16, 32>}]} {
    %c0 = arith.constant 0 : index
    %c0_0 = arith.constant 0 : index
    %0 = vector.load %arg1[%c0, %c0_0] : memref<16x32xf32, #tpu.memory_space<vmem>>, vector<16x32xf32>
    %c0_1 = arith.constant 0 : index
    %c0_2 = arith.constant 0 : index
    %1 = vector.load %arg2[%c0_1, %c0_2] : memref<32x32xf32, #tpu.memory_space<vmem>>, vector<32x32xf32>
    %c0_3 = arith.constant 0 : index
    %c0_4 = arith.constant 0 : index
    %2 = vector.load %arg3[%c0_3, %c0_4] : memref<16x32xf32, #tpu.memory_space<vmem>>, vector<16x32xf32>
    %c0_5 = arith.constant 0 : index
    %c0_6 = arith.constant 0 : index
    %3 = vector.load %arg4[%c0_5, %c0_6] : memref<32x32xf32, #tpu.memory_space<vmem>>, vector<32x32xf32>
    %c0_7 = arith.constant 0 : index
    %c0_8 = arith.constant 0 : index
    %4 = vector.load %arg5[%c0_7, %c0_8] : memref<6x32xf32, #tpu.memory_space<vmem>>, vector<1x32xf32>
    %c1 = arith.constant 1 : index
    %c0_9 = arith.constant 0 : index
    %5 = vector.load %arg5[%c1, %c0_9] : memref<6x32xf32, #tpu.memory_space<vmem>>, vector<1x32xf32>
    %cst = arith.constant dense<0.000000e+00> : vector<16xf32>
    %6 = vector.multi_reduction <add>, %0, %cst [1] : vector<16x32xf32> to vector<16xf32>
    %7 = vector.shape_cast %6 : vector<16xf32> to vector<16x1xf32>
    %cst_10 = arith.constant 3.200000e+01 : f32
    %8 = vector.broadcast %cst_10 : f32 to vector<16x1xf32>
    %9 = arith.divf %7, %8 : vector<16x1xf32>
    %10 = vector.broadcast %9 : vector<16x1xf32> to vector<16x32xf32>
    %11 = arith.subf %0, %10 : vector<16x32xf32>
    %12 = arith.mulf %11, %11 : vector<16x32xf32>
    %cst_11 = arith.constant dense<0.000000e+00> : vector<16xf32>
    %13 = vector.multi_reduction <add>, %12, %cst_11 [1] : vector<16x32xf32> to vector<16xf32>
    %14 = vector.shape_cast %13 : vector<16xf32> to vector<16x1xf32>
    %cst_12 = arith.constant 3.200000e+01 : f32
    %15 = vector.broadcast %cst_12 : f32 to vector<16x1xf32>
    %16 = arith.divf %14, %15 : vector<16x1xf32>
    %17 = vector.broadcast %9 : vector<16x1xf32> to vector<16x32xf32>
    %18 = arith.subf %0, %17 : vector<16x32xf32>
    %cst_13 = arith.constant 9.99999974E-6 : f32
    %19 = vector.broadcast %cst_13 : f32 to vector<16x1xf32>
    %20 = arith.addf %16, %19 : vector<16x1xf32>
    %21 = math.rsqrt %20 : vector<16x1xf32>
    %22 = vector.broadcast %21 : vector<16x1xf32> to vector<16x32xf32>
    %23 = arith.mulf %18, %22 : vector<16x32xf32>
    %24 = vector.broadcast %4 : vector<1x32xf32> to vector<16x32xf32>
    %25 = arith.mulf %23, %24 : vector<16x32xf32>
    %26 = vector.broadcast %5 : vector<1x32xf32> to vector<16x32xf32>
    %27 = arith.addf %25, %26 : vector<16x32xf32>
    %28 = arith.addf %27, %2 : vector<16x32xf32>
    %29 = arith.truncf %28 : vector<16x32xf32> to vector<16x32xbf16>
    %c0_14 = arith.constant 0 : index
    %c0_15 = arith.constant 0 : index
    %30 = vector.load %arg7[%c0_14, %c0_15] : memref<32x64xbf16, #tpu.memory_space<vmem>>, vector<32x64xbf16>
    %cst_16 = arith.constant dense<0.000000e+00> : vector<16x64xf32>
    %31 = tpu.matmul %29, %30, %cst_16 {dimension_numbers = #tpu.dot_dimension_numbers<[1], [0], [0], [1], [0, 0, 1, 1], [], []>} : vector<16x32xbf16>, vector<32x64xbf16>, vector<16x64xf32> -> vector<16x64xf32>
    %32 = vector.extract_strided_slice %31 {offsets = [0, 0], sizes = [16, 32], strides = [1, 1]} : vector<16x64xf32> to vector<16x32xf32>
    %c0_17 = arith.constant 0 : index
    %c0_18 = arith.constant 0 : index
    %33 = vector.load %arg6[%c0_17, %c0_18] : memref<8x32xf32, #tpu.memory_space<vmem>>, vector<1x32xf32>
    %34 = vector.broadcast %33 : vector<1x32xf32> to vector<16x32xf32>
    %35 = arith.addf %32, %34 : vector<16x32xf32>
    %36 = vector.extract_strided_slice %31 {offsets = [0, 32], sizes = [16, 32], strides = [1, 1]} : vector<16x64xf32> to vector<16x32xf32>
    %c1_19 = arith.constant 1 : index
    %c0_20 = arith.constant 0 : index
    %37 = vector.load %arg6[%c1_19, %c0_20] : memref<8x32xf32, #tpu.memory_space<vmem>>, vector<1x32xf32>
    %38 = vector.broadcast %37 : vector<1x32xf32> to vector<16x32xf32>
    %39 = arith.addf %36, %38 : vector<16x32xf32>
    %40 = arith.truncf %27 : vector<16x32xf32> to vector<16x32xbf16>
    %c0_21 = arith.constant 0 : index
    %c0_22 = arith.constant 0 : index
    %41 = vector.load %arg8[%c0_21, %c0_22] : memref<32x32xbf16, #tpu.memory_space<vmem>>, vector<32x32xbf16>
    %cst_23 = arith.constant dense<0.000000e+00> : vector<16x32xf32>
    %42 = tpu.matmul %40, %41, %cst_23 {dimension_numbers = #tpu.dot_dimension_numbers<[1], [0], [0], [1], [0, 0, 1, 1], [], []>} : vector<16x32xbf16>, vector<32x32xbf16>, vector<16x32xf32> -> vector<16x32xf32>
    %c2 = arith.constant 2 : index
    %c0_24 = arith.constant 0 : index
    %43 = vector.load %arg6[%c2, %c0_24] : memref<8x32xf32, #tpu.memory_space<vmem>>, vector<1x32xf32>
    %44 = vector.broadcast %43 : vector<1x32xf32> to vector<16x32xf32>
    %45 = arith.addf %42, %44 : vector<16x32xf32>
    %c3 = arith.constant 3 : index
    %c0_25 = arith.constant 0 : index
    %46 = vector.load %arg6[%c3, %c0_25] : memref<8x32xf32, #tpu.memory_space<vmem>>, vector<1x32xf32>
    %cst_26 = arith.constant 0.353553385 : f32
    %47 = vector.broadcast %cst_26 : f32 to vector<16x32xf32>
    %48 = arith.mulf %35, %47 : vector<16x32xf32>
    %49 = vector.shape_cast %48 : vector<16x32xf32> to vector<2x8x32xf32>
    %50 = arith.truncf %49 : vector<2x8x32xf32> to vector<2x8x32xbf16>
    %51 = vector.shape_cast %39 : vector<16x32xf32> to vector<2x8x32xf32>
    %52 = arith.truncf %51 : vector<2x8x32xf32> to vector<2x8x32xbf16>
    %53 = vector.shape_cast %45 : vector<16x32xf32> to vector<2x8x32xf32>
    %54 = arith.truncf %53 : vector<2x8x32xf32> to vector<2x8x32xbf16>
    %cst_27 = arith.constant 0.000000e+00 : f32
    %55 = vector.broadcast %cst_27 : f32 to vector<16x32xf32>
    %56 = vector.extract_strided_slice %50 {offsets = [0, 0, 0], sizes = [2, 8, 8], strides = [1, 1, 1]} : vector<2x8x32xbf16> to vector<2x8x8xbf16>
    %57 = vector.extract_strided_slice %52 {offsets = [0, 0, 0], sizes = [2, 8, 8], strides = [1, 1, 1]} : vector<2x8x32xbf16> to vector<2x8x8xbf16>
    "tpu.trace_start"() <{level = 10 : i32, message = "bqd,bkd->bqk"}> : () -> ()
    %cst_28 = arith.constant dense<0.000000e+00> : vector<2x8x8xf32>
    %58 = tpu.matmul %56, %57, %cst_28 {dimension_numbers = #tpu.dot_dimension_numbers<[2], [2], [1], [1], [0, 0, 0, 1, 1, 1], [0], [0]>} : vector<2x8x8xbf16>, vector<2x8x8xbf16>, vector<2x8x8xf32> -> vector<2x8x8xf32>
    "tpu.trace_stop"() : () -> ()
    %cst_29 = arith.constant dense<0xFF800000> : vector<2x8xf32>
    %59 = vector.multi_reduction <maximumf>, %58, %cst_29 [2] : vector<2x8x8xf32> to vector<2x8xf32>
    %60 = vector.shape_cast %59 : vector<2x8xf32> to vector<2x8x1xf32>
    %61 = vector.broadcast %60 : vector<2x8x1xf32> to vector<2x8x8xf32>
    %62 = arith.subf %58, %61 : vector<2x8x8xf32>
    %63 = math.exp %62 : vector<2x8x8xf32>
    %cst_30 = arith.constant dense<0.000000e+00> : vector<2x8xf32>
    %64 = vector.multi_reduction <add>, %63, %cst_30 [2] : vector<2x8x8xf32> to vector<2x8xf32>
    %65 = vector.shape_cast %64 : vector<2x8xf32> to vector<2x8x1xf32>
    %66 = tpu.reciprocal %65 {approx = true} : vector<2x8x1xf32> -> vector<2x8x1xf32>
    %67 = arith.mulf %65, %66 : vector<2x8x1xf32>
    %cst_31 = arith.constant 2.000000e+00 : f32
    %68 = vector.broadcast %cst_31 : f32 to vector<2x8x1xf32>
    %69 = arith.subf %68, %67 : vector<2x8x1xf32>
    %70 = arith.mulf %66, %69 : vector<2x8x1xf32>
    %71 = vector.broadcast %70 : vector<2x8x1xf32> to vector<2x8x8xf32>
    %72 = arith.mulf %63, %71 : vector<2x8x8xf32>
    %73 = arith.truncf %72 : vector<2x8x8xf32> to vector<2x8x8xbf16>
    %74 = vector.extract_strided_slice %54 {offsets = [0, 0, 0], sizes = [2, 8, 8], strides = [1, 1, 1]} : vector<2x8x32xbf16> to vector<2x8x8xbf16>
    "tpu.trace_start"() <{level = 10 : i32, message = "bqk,bkd->bqd"}> : () -> ()
    %cst_32 = arith.constant dense<0.000000e+00> : vector<2x8x8xf32>
    %75 = tpu.matmul %73, %74, %cst_32 {dimension_numbers = #tpu.dot_dimension_numbers<[2], [1], [1], [2], [0, 0, 0, 1, 1, 2], [0], [0]>} : vector<2x8x8xbf16>, vector<2x8x8xbf16>, vector<2x8x8xf32> -> vector<2x8x8xf32>
    "tpu.trace_stop"() : () -> ()
    %76 = vector.shape_cast %75 : vector<2x8x8xf32> to vector<16x8xf32>
    %77 = arith.truncf %76 : vector<16x8xf32> to vector<16x8xbf16>
    %c0_33 = arith.constant 0 : index
    %c0_34 = arith.constant 0 : index
    %78 = vector.load %arg9[%c0_33, %c0_34] : memref<32x32xbf16, #tpu.memory_space<vmem>>, vector<8x32xbf16>
    %cst_35 = arith.constant dense<0.000000e+00> : vector<16x32xf32>
    %79 = tpu.matmul %77, %78, %cst_35 {dimension_numbers = #tpu.dot_dimension_numbers<[1], [0], [0], [1], [0, 0, 1, 1], [], []>} : vector<16x8xbf16>, vector<8x32xbf16>, vector<16x32xf32> -> vector<16x32xf32>
    %80 = arith.addf %55, %79 : vector<16x32xf32>
    %81 = vector.extract_strided_slice %50 {offsets = [0, 0, 8], sizes = [2, 8, 8], strides = [1, 1, 1]} : vector<2x8x32xbf16> to vector<2x8x8xbf16>
    %82 = vector.extract_strided_slice %52 {offsets = [0, 0, 8], sizes = [2, 8, 8], strides = [1, 1, 1]} : vector<2x8x32xbf16> to vector<2x8x8xbf16>
    "tpu.trace_start"() <{level = 10 : i32, message = "bqd,bkd->bqk"}> : () -> ()
    %cst_36 = arith.constant dense<0.000000e+00> : vector<2x8x8xf32>
    %83 = tpu.matmul %81, %82, %cst_36 {dimension_numbers = #tpu.dot_dimension_numbers<[2], [2], [1], [1], [0, 0, 0, 1, 1, 1], [0], [0]>} : vector<2x8x8xbf16>, vector<2x8x8xbf16>, vector<2x8x8xf32> -> vector<2x8x8xf32>
    "tpu.trace_stop"() : () -> ()
    %cst_37 = arith.constant dense<0xFF800000> : vector<2x8xf32>
    %84 = vector.multi_reduction <maximumf>, %83, %cst_37 [2] : vector<2x8x8xf32> to vector<2x8xf32>
    %85 = vector.shape_cast %84 : vector<2x8xf32> to vector<2x8x1xf32>
    %86 = vector.broadcast %85 : vector<2x8x1xf32> to vector<2x8x8xf32>
    %87 = arith.subf %83, %86 : vector<2x8x8xf32>
    %88 = math.exp %87 : vector<2x8x8xf32>
    %cst_38 = arith.constant dense<0.000000e+00> : vector<2x8xf32>
    %89 = vector.multi_reduction <add>, %88, %cst_38 [2] : vector<2x8x8xf32> to vector<2x8xf32>
    %90 = vector.shape_cast %89 : vector<2x8xf32> to vector<2x8x1xf32>
    %91 = tpu.reciprocal %90 {approx = true} : vector<2x8x1xf32> -> vector<2x8x1xf32>
    %92 = arith.mulf %90, %91 : vector<2x8x1xf32>
    %cst_39 = arith.constant 2.000000e+00 : f32
    %93 = vector.broadcast %cst_39 : f32 to vector<2x8x1xf32>
    %94 = arith.subf %93, %92 : vector<2x8x1xf32>
    %95 = arith.mulf %91, %94 : vector<2x8x1xf32>
    %96 = vector.broadcast %95 : vector<2x8x1xf32> to vector<2x8x8xf32>
    %97 = arith.mulf %88, %96 : vector<2x8x8xf32>
    %98 = arith.truncf %97 : vector<2x8x8xf32> to vector<2x8x8xbf16>
    %99 = vector.extract_strided_slice %54 {offsets = [0, 0, 8], sizes = [2, 8, 8], strides = [1, 1, 1]} : vector<2x8x32xbf16> to vector<2x8x8xbf16>
    "tpu.trace_start"() <{level = 10 : i32, message = "bqk,bkd->bqd"}> : () -> ()
    %cst_40 = arith.constant dense<0.000000e+00> : vector<2x8x8xf32>
    %100 = tpu.matmul %98, %99, %cst_40 {dimension_numbers = #tpu.dot_dimension_numbers<[2], [1], [1], [2], [0, 0, 0, 1, 1, 2], [0], [0]>} : vector<2x8x8xbf16>, vector<2x8x8xbf16>, vector<2x8x8xf32> -> vector<2x8x8xf32>
    "tpu.trace_stop"() : () -> ()
    %101 = vector.shape_cast %100 : vector<2x8x8xf32> to vector<16x8xf32>
    %102 = arith.truncf %101 : vector<16x8xf32> to vector<16x8xbf16>
    %c8 = arith.constant 8 : index
    %c0_41 = arith.constant 0 : index
    %103 = vector.load %arg9[%c8, %c0_41] : memref<32x32xbf16, #tpu.memory_space<vmem>>, vector<8x32xbf16>
    %cst_42 = arith.constant dense<0.000000e+00> : vector<16x32xf32>
    %104 = tpu.matmul %102, %103, %cst_42 {dimension_numbers = #tpu.dot_dimension_numbers<[1], [0], [0], [1], [0, 0, 1, 1], [], []>} : vector<16x8xbf16>, vector<8x32xbf16>, vector<16x32xf32> -> vector<16x32xf32>
    %105 = arith.addf %80, %104 : vector<16x32xf32>
    %106 = vector.extract_strided_slice %50 {offsets = [0, 0, 16], sizes = [2, 8, 8], strides = [1, 1, 1]} : vector<2x8x32xbf16> to vector<2x8x8xbf16>
    %107 = vector.extract_strided_slice %52 {offsets = [0, 0, 16], sizes = [2, 8, 8], strides = [1, 1, 1]} : vector<2x8x32xbf16> to vector<2x8x8xbf16>
    "tpu.trace_start"() <{level = 10 : i32, message = "bqd,bkd->bqk"}> : () -> ()
    %cst_43 = arith.constant dense<0.000000e+00> : vector<2x8x8xf32>
    %108 = tpu.matmul %106, %107, %cst_43 {dimension_numbers = #tpu.dot_dimension_numbers<[2], [2], [1], [1], [0, 0, 0, 1, 1, 1], [0], [0]>} : vector<2x8x8xbf16>, vector<2x8x8xbf16>, vector<2x8x8xf32> -> vector<2x8x8xf32>
    "tpu.trace_stop"() : () -> ()
    %cst_44 = arith.constant dense<0xFF800000> : vector<2x8xf32>
    %109 = vector.multi_reduction <maximumf>, %108, %cst_44 [2] : vector<2x8x8xf32> to vector<2x8xf32>
    %110 = vector.shape_cast %109 : vector<2x8xf32> to vector<2x8x1xf32>
    %111 = vector.broadcast %110 : vector<2x8x1xf32> to vector<2x8x8xf32>
    %112 = arith.subf %108, %111 : vector<2x8x8xf32>
    %113 = math.exp %112 : vector<2x8x8xf32>
    %cst_45 = arith.constant dense<0.000000e+00> : vector<2x8xf32>
    %114 = vector.multi_reduction <add>, %113, %cst_45 [2] : vector<2x8x8xf32> to vector<2x8xf32>
    %115 = vector.shape_cast %114 : vector<2x8xf32> to vector<2x8x1xf32>
    %116 = tpu.reciprocal %115 {approx = true} : vector<2x8x1xf32> -> vector<2x8x1xf32>
    %117 = arith.mulf %115, %116 : vector<2x8x1xf32>
    %cst_46 = arith.constant 2.000000e+00 : f32
    %118 = vector.broadcast %cst_46 : f32 to vector<2x8x1xf32>
    %119 = arith.subf %118, %117 : vector<2x8x1xf32>
    %120 = arith.mulf %116, %119 : vector<2x8x1xf32>
    %121 = vector.broadcast %120 : vector<2x8x1xf32> to vector<2x8x8xf32>
    %122 = arith.mulf %113, %121 : vector<2x8x8xf32>
    %123 = arith.truncf %122 : vector<2x8x8xf32> to vector<2x8x8xbf16>
    %124 = vector.extract_strided_slice %54 {offsets = [0, 0, 16], sizes = [2, 8, 8], strides = [1, 1, 1]} : vector<2x8x32xbf16> to vector<2x8x8xbf16>
    "tpu.trace_start"() <{level = 10 : i32, message = "bqk,bkd->bqd"}> : () -> ()
    %cst_47 = arith.constant dense<0.000000e+00> : vector<2x8x8xf32>
    %125 = tpu.matmul %123, %124, %cst_47 {dimension_numbers = #tpu.dot_dimension_numbers<[2], [1], [1], [2], [0, 0, 0, 1, 1, 2], [0], [0]>} : vector<2x8x8xbf16>, vector<2x8x8xbf16>, vector<2x8x8xf32> -> vector<2x8x8xf32>
    "tpu.trace_stop"() : () -> ()
    %126 = vector.shape_cast %125 : vector<2x8x8xf32> to vector<16x8xf32>
    %127 = arith.truncf %126 : vector<16x8xf32> to vector<16x8xbf16>
    %c16 = arith.constant 16 : index
    %c0_48 = arith.constant 0 : index
    %128 = vector.load %arg9[%c16, %c0_48] : memref<32x32xbf16, #tpu.memory_space<vmem>>, vector<8x32xbf16>
    %cst_49 = arith.constant dense<0.000000e+00> : vector<16x32xf32>
    %129 = tpu.matmul %127, %128, %cst_49 {dimension_numbers = #tpu.dot_dimension_numbers<[1], [0], [0], [1], [0, 0, 1, 1], [], []>} : vector<16x8xbf16>, vector<8x32xbf16>, vector<16x32xf32> -> vector<16x32xf32>
    %130 = arith.addf %105, %129 : vector<16x32xf32>
    %131 = vector.extract_strided_slice %50 {offsets = [0, 0, 24], sizes = [2, 8, 8], strides = [1, 1, 1]} : vector<2x8x32xbf16> to vector<2x8x8xbf16>
    %132 = vector.extract_strided_slice %52 {offsets = [0, 0, 24], sizes = [2, 8, 8], strides = [1, 1, 1]} : vector<2x8x32xbf16> to vector<2x8x8xbf16>
    "tpu.trace_start"() <{level = 10 : i32, message = "bqd,bkd->bqk"}> : () -> ()
    %cst_50 = arith.constant dense<0.000000e+00> : vector<2x8x8xf32>
    %133 = tpu.matmul %131, %132, %cst_50 {dimension_numbers = #tpu.dot_dimension_numbers<[2], [2], [1], [1], [0, 0, 0, 1, 1, 1], [0], [0]>} : vector<2x8x8xbf16>, vector<2x8x8xbf16>, vector<2x8x8xf32> -> vector<2x8x8xf32>
    "tpu.trace_stop"() : () -> ()
    %cst_51 = arith.constant dense<0xFF800000> : vector<2x8xf32>
    %134 = vector.multi_reduction <maximumf>, %133, %cst_51 [2] : vector<2x8x8xf32> to vector<2x8xf32>
    %135 = vector.shape_cast %134 : vector<2x8xf32> to vector<2x8x1xf32>
    %136 = vector.broadcast %135 : vector<2x8x1xf32> to vector<2x8x8xf32>
    %137 = arith.subf %133, %136 : vector<2x8x8xf32>
    %138 = math.exp %137 : vector<2x8x8xf32>
    %cst_52 = arith.constant dense<0.000000e+00> : vector<2x8xf32>
    %139 = vector.multi_reduction <add>, %138, %cst_52 [2] : vector<2x8x8xf32> to vector<2x8xf32>
    %140 = vector.shape_cast %139 : vector<2x8xf32> to vector<2x8x1xf32>
    %141 = tpu.reciprocal %140 {approx = true} : vector<2x8x1xf32> -> vector<2x8x1xf32>
    %142 = arith.mulf %140, %141 : vector<2x8x1xf32>
    %cst_53 = arith.constant 2.000000e+00 : f32
    %143 = vector.broadcast %cst_53 : f32 to vector<2x8x1xf32>
    %144 = arith.subf %143, %142 : vector<2x8x1xf32>
    %145 = arith.mulf %141, %144 : vector<2x8x1xf32>
    %146 = vector.broadcast %145 : vector<2x8x1xf32> to vector<2x8x8xf32>
    %147 = arith.mulf %138, %146 : vector<2x8x8xf32>
    %148 = arith.truncf %147 : vector<2x8x8xf32> to vector<2x8x8xbf16>
    %149 = vector.extract_strided_slice %54 {offsets = [0, 0, 24], sizes = [2, 8, 8], strides = [1, 1, 1]} : vector<2x8x32xbf16> to vector<2x8x8xbf16>
    "tpu.trace_start"() <{level = 10 : i32, message = "bqk,bkd->bqd"}> : () -> ()
    %cst_54 = arith.constant dense<0.000000e+00> : vector<2x8x8xf32>
    %150 = tpu.matmul %148, %149, %cst_54 {dimension_numbers = #tpu.dot_dimension_numbers<[2], [1], [1], [2], [0, 0, 0, 1, 1, 2], [0], [0]>} : vector<2x8x8xbf16>, vector<2x8x8xbf16>, vector<2x8x8xf32> -> vector<2x8x8xf32>
    "tpu.trace_stop"() : () -> ()
    %151 = vector.shape_cast %150 : vector<2x8x8xf32> to vector<16x8xf32>
    %152 = arith.truncf %151 : vector<16x8xf32> to vector<16x8xbf16>
    %c24 = arith.constant 24 : index
    %c0_55 = arith.constant 0 : index
    %153 = vector.load %arg9[%c24, %c0_55] : memref<32x32xbf16, #tpu.memory_space<vmem>>, vector<8x32xbf16>
    %cst_56 = arith.constant dense<0.000000e+00> : vector<16x32xf32>
    %154 = tpu.matmul %152, %153, %cst_56 {dimension_numbers = #tpu.dot_dimension_numbers<[1], [0], [0], [1], [0, 0, 1, 1], [], []>} : vector<16x8xbf16>, vector<8x32xbf16>, vector<16x32xf32> -> vector<16x32xf32>
    %155 = arith.addf %130, %154 : vector<16x32xf32>
    %156 = vector.broadcast %46 : vector<1x32xf32> to vector<16x32xf32>
    %157 = arith.addf %155, %156 : vector<16x32xf32>
    %158 = arith.addf %27, %157 : vector<16x32xf32>
    %c2_57 = arith.constant 2 : index
    %c0_58 = arith.constant 0 : index
    %159 = vector.load %arg5[%c2_57, %c0_58] : memref<6x32xf32, #tpu.memory_space<vmem>>, vector<1x32xf32>
    %c3_59 = arith.constant 3 : index
    %c0_60 = arith.constant 0 : index
    %160 = vector.load %arg5[%c3_59, %c0_60] : memref<6x32xf32, #tpu.memory_space<vmem>>, vector<1x32xf32>
    %cst_61 = arith.constant dense<0.000000e+00> : vector<16xf32>
    %161 = vector.multi_reduction <add>, %158, %cst_61 [1] : vector<16x32xf32> to vector<16xf32>
    %162 = vector.shape_cast %161 : vector<16xf32> to vector<16x1xf32>
    %cst_62 = arith.constant 3.200000e+01 : f32
    %163 = vector.broadcast %cst_62 : f32 to vector<16x1xf32>
    %164 = arith.divf %162, %163 : vector<16x1xf32>
    %165 = vector.broadcast %164 : vector<16x1xf32> to vector<16x32xf32>
    %166 = arith.subf %158, %165 : vector<16x32xf32>
    %167 = arith.mulf %166, %166 : vector<16x32xf32>
    %cst_63 = arith.constant dense<0.000000e+00> : vector<16xf32>
    %168 = vector.multi_reduction <add>, %167, %cst_63 [1] : vector<16x32xf32> to vector<16xf32>
    %169 = vector.shape_cast %168 : vector<16xf32> to vector<16x1xf32>
    %cst_64 = arith.constant 3.200000e+01 : f32
    %170 = vector.broadcast %cst_64 : f32 to vector<16x1xf32>
    %171 = arith.divf %169, %170 : vector<16x1xf32>
    %172 = vector.broadcast %164 : vector<16x1xf32> to vector<16x32xf32>
    %173 = arith.subf %158, %172 : vector<16x32xf32>
    %cst_65 = arith.constant 9.99999974E-6 : f32
    %174 = vector.broadcast %cst_65 : f32 to vector<16x1xf32>
    %175 = arith.addf %171, %174 : vector<16x1xf32>
    %176 = math.rsqrt %175 : vector<16x1xf32>
    %177 = vector.broadcast %176 : vector<16x1xf32> to vector<16x32xf32>
    %178 = arith.mulf %173, %177 : vector<16x32xf32>
    %179 = vector.broadcast %159 : vector<1x32xf32> to vector<16x32xf32>
    %180 = arith.mulf %178, %179 : vector<16x32xf32>
    %181 = vector.broadcast %160 : vector<1x32xf32> to vector<16x32xf32>
    %182 = arith.addf %180, %181 : vector<16x32xf32>
    %183 = arith.addf %182, %2 : vector<16x32xf32>
    %184 = arith.truncf %183 : vector<16x32xf32> to vector<16x32xbf16>
    %c0_66 = arith.constant 0 : index
    %c0_67 = arith.constant 0 : index
    %185 = vector.load %arg10[%c0_66, %c0_67] : memref<32x32xbf16, #tpu.memory_space<vmem>>, vector<32x32xbf16>
    %cst_68 = arith.constant dense<0.000000e+00> : vector<16x32xf32>
    %186 = tpu.matmul %184, %185, %cst_68 {dimension_numbers = #tpu.dot_dimension_numbers<[1], [0], [0], [1], [0, 0, 1, 1], [], []>} : vector<16x32xbf16>, vector<32x32xbf16>, vector<16x32xf32> -> vector<16x32xf32>
    %c4 = arith.constant 4 : index
    %c0_69 = arith.constant 0 : index
    %187 = vector.load %arg6[%c4, %c0_69] : memref<8x32xf32, #tpu.memory_space<vmem>>, vector<1x32xf32>
    %188 = vector.broadcast %187 : vector<1x32xf32> to vector<16x32xf32>
    %189 = arith.addf %186, %188 : vector<16x32xf32>
    %190 = arith.addf %1, %3 : vector<32x32xf32>
    %191 = arith.truncf %190 : vector<32x32xf32> to vector<32x32xbf16>
    %c0_70 = arith.constant 0 : index
    %c0_71 = arith.constant 0 : index
    %192 = vector.load %arg11[%c0_70, %c0_71] : memref<32x32xbf16, #tpu.memory_space<vmem>>, vector<32x32xbf16>
    %cst_72 = arith.constant dense<0.000000e+00> : vector<32x32xf32>
    %193 = tpu.matmul %191, %192, %cst_72 {dimension_numbers = #tpu.dot_dimension_numbers<[1], [0], [0], [1], [0, 0, 1, 1], [], []>} : vector<32x32xbf16>, vector<32x32xbf16>, vector<32x32xf32> -> vector<32x32xf32>
    %c5 = arith.constant 5 : index
    %c0_73 = arith.constant 0 : index
    %194 = vector.load %arg6[%c5, %c0_73] : memref<8x32xf32, #tpu.memory_space<vmem>>, vector<1x32xf32>
    %195 = vector.broadcast %194 : vector<1x32xf32> to vector<32x32xf32>
    %196 = arith.addf %193, %195 : vector<32x32xf32>
    %197 = arith.truncf %1 : vector<32x32xf32> to vector<32x32xbf16>
    %c0_74 = arith.constant 0 : index
    %c0_75 = arith.constant 0 : index
    %198 = vector.load %arg12[%c0_74, %c0_75] : memref<32x32xbf16, #tpu.memory_space<vmem>>, vector<32x32xbf16>
    %cst_76 = arith.constant dense<0.000000e+00> : vector<32x32xf32>
    %199 = tpu.matmul %197, %198, %cst_76 {dimension_numbers = #tpu.dot_dimension_numbers<[1], [0], [0], [1], [0, 0, 1, 1], [], []>} : vector<32x32xbf16>, vector<32x32xbf16>, vector<32x32xf32> -> vector<32x32xf32>
    %c6 = arith.constant 6 : index
    %c0_77 = arith.constant 0 : index
    %200 = vector.load %arg6[%c6, %c0_77] : memref<8x32xf32, #tpu.memory_space<vmem>>, vector<1x32xf32>
    %201 = vector.broadcast %200 : vector<1x32xf32> to vector<32x32xf32>
    %202 = arith.addf %199, %201 : vector<32x32xf32>
    %c7 = arith.constant 7 : index
    %c0_78 = arith.constant 0 : index
    %203 = vector.load %arg6[%c7, %c0_78] : memref<8x32xf32, #tpu.memory_space<vmem>>, vector<1x32xf32>
    %cst_79 = arith.constant 0.353553385 : f32
    %204 = vector.broadcast %cst_79 : f32 to vector<16x32xf32>
    %205 = arith.mulf %189, %204 : vector<16x32xf32>
    %206 = vector.shape_cast %205 : vector<16x32xf32> to vector<2x8x32xf32>
    %207 = arith.truncf %206 : vector<2x8x32xf32> to vector<2x8x32xbf16>
    %208 = vector.shape_cast %196 : vector<32x32xf32> to vector<2x16x32xf32>
    %209 = arith.truncf %208 : vector<2x16x32xf32> to vector<2x16x32xbf16>
    %210 = vector.shape_cast %202 : vector<32x32xf32> to vector<2x16x32xf32>
    %211 = arith.truncf %210 : vector<2x16x32xf32> to vector<2x16x32xbf16>
    %cst_80 = arith.constant 0.000000e+00 : f32
    %212 = vector.broadcast %cst_80 : f32 to vector<16x32xf32>
    %213 = vector.extract_strided_slice %207 {offsets = [0, 0, 0], sizes = [2, 8, 8], strides = [1, 1, 1]} : vector<2x8x32xbf16> to vector<2x8x8xbf16>
    %214 = vector.extract_strided_slice %209 {offsets = [0, 0, 0], sizes = [2, 16, 8], strides = [1, 1, 1]} : vector<2x16x32xbf16> to vector<2x16x8xbf16>
    "tpu.trace_start"() <{level = 10 : i32, message = "bqd,bkd->bqk"}> : () -> ()
    %cst_81 = arith.constant dense<0.000000e+00> : vector<2x8x16xf32>
    %215 = tpu.matmul %213, %214, %cst_81 {dimension_numbers = #tpu.dot_dimension_numbers<[2], [2], [1], [1], [0, 0, 0, 1, 1, 1], [0], [0]>} : vector<2x8x8xbf16>, vector<2x16x8xbf16>, vector<2x8x16xf32> -> vector<2x8x16xf32>
    "tpu.trace_stop"() : () -> ()
    %cst_82 = arith.constant dense<0xFF800000> : vector<2x8xf32>
    %216 = vector.multi_reduction <maximumf>, %215, %cst_82 [2] : vector<2x8x16xf32> to vector<2x8xf32>
    %217 = vector.shape_cast %216 : vector<2x8xf32> to vector<2x8x1xf32>
    %218 = vector.broadcast %217 : vector<2x8x1xf32> to vector<2x8x16xf32>
    %219 = arith.subf %215, %218 : vector<2x8x16xf32>
    %220 = math.exp %219 : vector<2x8x16xf32>
    %cst_83 = arith.constant dense<0.000000e+00> : vector<2x8xf32>
    %221 = vector.multi_reduction <add>, %220, %cst_83 [2] : vector<2x8x16xf32> to vector<2x8xf32>
    %222 = vector.shape_cast %221 : vector<2x8xf32> to vector<2x8x1xf32>
    %223 = tpu.reciprocal %222 {approx = true} : vector<2x8x1xf32> -> vector<2x8x1xf32>
    %224 = arith.mulf %222, %223 : vector<2x8x1xf32>
    %cst_84 = arith.constant 2.000000e+00 : f32
    %225 = vector.broadcast %cst_84 : f32 to vector<2x8x1xf32>
    %226 = arith.subf %225, %224 : vector<2x8x1xf32>
    %227 = arith.mulf %223, %226 : vector<2x8x1xf32>
    %228 = vector.broadcast %227 : vector<2x8x1xf32> to vector<2x8x16xf32>
    %229 = arith.mulf %220, %228 : vector<2x8x16xf32>
    %230 = arith.truncf %229 : vector<2x8x16xf32> to vector<2x8x16xbf16>
    %231 = vector.extract_strided_slice %211 {offsets = [0, 0, 0], sizes = [2, 16, 8], strides = [1, 1, 1]} : vector<2x16x32xbf16> to vector<2x16x8xbf16>
    "tpu.trace_start"() <{level = 10 : i32, message = "bqk,bkd->bqd"}> : () -> ()
    %cst_85 = arith.constant dense<0.000000e+00> : vector<2x8x8xf32>
    %232 = tpu.matmul %230, %231, %cst_85 {dimension_numbers = #tpu.dot_dimension_numbers<[2], [1], [1], [2], [0, 0, 0, 1, 1, 2], [0], [0]>} : vector<2x8x16xbf16>, vector<2x16x8xbf16>, vector<2x8x8xf32> -> vector<2x8x8xf32>
    "tpu.trace_stop"() : () -> ()
    %233 = vector.shape_cast %232 : vector<2x8x8xf32> to vector<16x8xf32>
    %234 = arith.truncf %233 : vector<16x8xf32> to vector<16x8xbf16>
    %c0_86 = arith.constant 0 : index
    %c0_87 = arith.constant 0 : index
    %235 = vector.load %arg13[%c0_86, %c0_87] : memref<32x32xbf16, #tpu.memory_space<vmem>>, vector<8x32xbf16>
    %cst_88 = arith.constant dense<0.000000e+00> : vector<16x32xf32>
    %236 = tpu.matmul %234, %235, %cst_88 {dimension_numbers = #tpu.dot_dimension_numbers<[1], [0], [0], [1], [0, 0, 1, 1], [], []>} : vector<16x8xbf16>, vector<8x32xbf16>, vector<16x32xf32> -> vector<16x32xf32>
    %237 = arith.addf %212, %236 : vector<16x32xf32>
    %238 = vector.extract_strided_slice %207 {offsets = [0, 0, 8], sizes = [2, 8, 8], strides = [1, 1, 1]} : vector<2x8x32xbf16> to vector<2x8x8xbf16>
    %239 = vector.extract_strided_slice %209 {offsets = [0, 0, 8], sizes = [2, 16, 8], strides = [1, 1, 1]} : vector<2x16x32xbf16> to vector<2x16x8xbf16>
    "tpu.trace_start"() <{level = 10 : i32, message = "bqd,bkd->bqk"}> : () -> ()
    %cst_89 = arith.constant dense<0.000000e+00> : vector<2x8x16xf32>
    %240 = tpu.matmul %238, %239, %cst_89 {dimension_numbers = #tpu.dot_dimension_numbers<[2], [2], [1], [1], [0, 0, 0, 1, 1, 1], [0], [0]>} : vector<2x8x8xbf16>, vector<2x16x8xbf16>, vector<2x8x16xf32> -> vector<2x8x16xf32>
    "tpu.trace_stop"() : () -> ()
    %cst_90 = arith.constant dense<0xFF800000> : vector<2x8xf32>
    %241 = vector.multi_reduction <maximumf>, %240, %cst_90 [2] : vector<2x8x16xf32> to vector<2x8xf32>
    %242 = vector.shape_cast %241 : vector<2x8xf32> to vector<2x8x1xf32>
    %243 = vector.broadcast %242 : vector<2x8x1xf32> to vector<2x8x16xf32>
    %244 = arith.subf %240, %243 : vector<2x8x16xf32>
    %245 = math.exp %244 : vector<2x8x16xf32>
    %cst_91 = arith.constant dense<0.000000e+00> : vector<2x8xf32>
    %246 = vector.multi_reduction <add>, %245, %cst_91 [2] : vector<2x8x16xf32> to vector<2x8xf32>
    %247 = vector.shape_cast %246 : vector<2x8xf32> to vector<2x8x1xf32>
    %248 = tpu.reciprocal %247 {approx = true} : vector<2x8x1xf32> -> vector<2x8x1xf32>
    %249 = arith.mulf %247, %248 : vector<2x8x1xf32>
    %cst_92 = arith.constant 2.000000e+00 : f32
    %250 = vector.broadcast %cst_92 : f32 to vector<2x8x1xf32>
    %251 = arith.subf %250, %249 : vector<2x8x1xf32>
    %252 = arith.mulf %248, %251 : vector<2x8x1xf32>
    %253 = vector.broadcast %252 : vector<2x8x1xf32> to vector<2x8x16xf32>
    %254 = arith.mulf %245, %253 : vector<2x8x16xf32>
    %255 = arith.truncf %254 : vector<2x8x16xf32> to vector<2x8x16xbf16>
    %256 = vector.extract_strided_slice %211 {offsets = [0, 0, 8], sizes = [2, 16, 8], strides = [1, 1, 1]} : vector<2x16x32xbf16> to vector<2x16x8xbf16>
    "tpu.trace_start"() <{level = 10 : i32, message = "bqk,bkd->bqd"}> : () -> ()
    %cst_93 = arith.constant dense<0.000000e+00> : vector<2x8x8xf32>
    %257 = tpu.matmul %255, %256, %cst_93 {dimension_numbers = #tpu.dot_dimension_numbers<[2], [1], [1], [2], [0, 0, 0, 1, 1, 2], [0], [0]>} : vector<2x8x16xbf16>, vector<2x16x8xbf16>, vector<2x8x8xf32> -> vector<2x8x8xf32>
    "tpu.trace_stop"() : () -> ()
    %258 = vector.shape_cast %257 : vector<2x8x8xf32> to vector<16x8xf32>
    %259 = arith.truncf %258 : vector<16x8xf32> to vector<16x8xbf16>
    %c8_94 = arith.constant 8 : index
    %c0_95 = arith.constant 0 : index
    %260 = vector.load %arg13[%c8_94, %c0_95] : memref<32x32xbf16, #tpu.memory_space<vmem>>, vector<8x32xbf16>
    %cst_96 = arith.constant dense<0.000000e+00> : vector<16x32xf32>
    %261 = tpu.matmul %259, %260, %cst_96 {dimension_numbers = #tpu.dot_dimension_numbers<[1], [0], [0], [1], [0, 0, 1, 1], [], []>} : vector<16x8xbf16>, vector<8x32xbf16>, vector<16x32xf32> -> vector<16x32xf32>
    %262 = arith.addf %237, %261 : vector<16x32xf32>
    %263 = vector.extract_strided_slice %207 {offsets = [0, 0, 16], sizes = [2, 8, 8], strides = [1, 1, 1]} : vector<2x8x32xbf16> to vector<2x8x8xbf16>
    %264 = vector.extract_strided_slice %209 {offsets = [0, 0, 16], sizes = [2, 16, 8], strides = [1, 1, 1]} : vector<2x16x32xbf16> to vector<2x16x8xbf16>
    "tpu.trace_start"() <{level = 10 : i32, message = "bqd,bkd->bqk"}> : () -> ()
    %cst_97 = arith.constant dense<0.000000e+00> : vector<2x8x16xf32>
    %265 = tpu.matmul %263, %264, %cst_97 {dimension_numbers = #tpu.dot_dimension_numbers<[2], [2], [1], [1], [0, 0, 0, 1, 1, 1], [0], [0]>} : vector<2x8x8xbf16>, vector<2x16x8xbf16>, vector<2x8x16xf32> -> vector<2x8x16xf32>
    "tpu.trace_stop"() : () -> ()
    %cst_98 = arith.constant dense<0xFF800000> : vector<2x8xf32>
    %266 = vector.multi_reduction <maximumf>, %265, %cst_98 [2] : vector<2x8x16xf32> to vector<2x8xf32>
    %267 = vector.shape_cast %266 : vector<2x8xf32> to vector<2x8x1xf32>
    %268 = vector.broadcast %267 : vector<2x8x1xf32> to vector<2x8x16xf32>
    %269 = arith.subf %265, %268 : vector<2x8x16xf32>
    %270 = math.exp %269 : vector<2x8x16xf32>
    %cst_99 = arith.constant dense<0.000000e+00> : vector<2x8xf32>
    %271 = vector.multi_reduction <add>, %270, %cst_99 [2] : vector<2x8x16xf32> to vector<2x8xf32>
    %272 = vector.shape_cast %271 : vector<2x8xf32> to vector<2x8x1xf32>
    %273 = tpu.reciprocal %272 {approx = true} : vector<2x8x1xf32> -> vector<2x8x1xf32>
    %274 = arith.mulf %272, %273 : vector<2x8x1xf32>
    %cst_100 = arith.constant 2.000000e+00 : f32
    %275 = vector.broadcast %cst_100 : f32 to vector<2x8x1xf32>
    %276 = arith.subf %275, %274 : vector<2x8x1xf32>
    %277 = arith.mulf %273, %276 : vector<2x8x1xf32>
    %278 = vector.broadcast %277 : vector<2x8x1xf32> to vector<2x8x16xf32>
    %279 = arith.mulf %270, %278 : vector<2x8x16xf32>
    %280 = arith.truncf %279 : vector<2x8x16xf32> to vector<2x8x16xbf16>
    %281 = vector.extract_strided_slice %211 {offsets = [0, 0, 16], sizes = [2, 16, 8], strides = [1, 1, 1]} : vector<2x16x32xbf16> to vector<2x16x8xbf16>
    "tpu.trace_start"() <{level = 10 : i32, message = "bqk,bkd->bqd"}> : () -> ()
    %cst_101 = arith.constant dense<0.000000e+00> : vector<2x8x8xf32>
    %282 = tpu.matmul %280, %281, %cst_101 {dimension_numbers = #tpu.dot_dimension_numbers<[2], [1], [1], [2], [0, 0, 0, 1, 1, 2], [0], [0]>} : vector<2x8x16xbf16>, vector<2x16x8xbf16>, vector<2x8x8xf32> -> vector<2x8x8xf32>
    "tpu.trace_stop"() : () -> ()
    %283 = vector.shape_cast %282 : vector<2x8x8xf32> to vector<16x8xf32>
    %284 = arith.truncf %283 : vector<16x8xf32> to vector<16x8xbf16>
    %c16_102 = arith.constant 16 : index
    %c0_103 = arith.constant 0 : index
    %285 = vector.load %arg13[%c16_102, %c0_103] : memref<32x32xbf16, #tpu.memory_space<vmem>>, vector<8x32xbf16>
    %cst_104 = arith.constant dense<0.000000e+00> : vector<16x32xf32>
    %286 = tpu.matmul %284, %285, %cst_104 {dimension_numbers = #tpu.dot_dimension_numbers<[1], [0], [0], [1], [0, 0, 1, 1], [], []>} : vector<16x8xbf16>, vector<8x32xbf16>, vector<16x32xf32> -> vector<16x32xf32>
    %287 = arith.addf %262, %286 : vector<16x32xf32>
    %288 = vector.extract_strided_slice %207 {offsets = [0, 0, 24], sizes = [2, 8, 8], strides = [1, 1, 1]} : vector<2x8x32xbf16> to vector<2x8x8xbf16>
    %289 = vector.extract_strided_slice %209 {offsets = [0, 0, 24], sizes = [2, 16, 8], strides = [1, 1, 1]} : vector<2x16x32xbf16> to vector<2x16x8xbf16>
    "tpu.trace_start"() <{level = 10 : i32, message = "bqd,bkd->bqk"}> : () -> ()
    %cst_105 = arith.constant dense<0.000000e+00> : vector<2x8x16xf32>
    %290 = tpu.matmul %288, %289, %cst_105 {dimension_numbers = #tpu.dot_dimension_numbers<[2], [2], [1], [1], [0, 0, 0, 1, 1, 1], [0], [0]>} : vector<2x8x8xbf16>, vector<2x16x8xbf16>, vector<2x8x16xf32> -> vector<2x8x16xf32>
    "tpu.trace_stop"() : () -> ()
    %cst_106 = arith.constant dense<0xFF800000> : vector<2x8xf32>
    %291 = vector.multi_reduction <maximumf>, %290, %cst_106 [2] : vector<2x8x16xf32> to vector<2x8xf32>
    %292 = vector.shape_cast %291 : vector<2x8xf32> to vector<2x8x1xf32>
    %293 = vector.broadcast %292 : vector<2x8x1xf32> to vector<2x8x16xf32>
    %294 = arith.subf %290, %293 : vector<2x8x16xf32>
    %295 = math.exp %294 : vector<2x8x16xf32>
    %cst_107 = arith.constant dense<0.000000e+00> : vector<2x8xf32>
    %296 = vector.multi_reduction <add>, %295, %cst_107 [2] : vector<2x8x16xf32> to vector<2x8xf32>
    %297 = vector.shape_cast %296 : vector<2x8xf32> to vector<2x8x1xf32>
    %298 = tpu.reciprocal %297 {approx = true} : vector<2x8x1xf32> -> vector<2x8x1xf32>
    %299 = arith.mulf %297, %298 : vector<2x8x1xf32>
    %cst_108 = arith.constant 2.000000e+00 : f32
    %300 = vector.broadcast %cst_108 : f32 to vector<2x8x1xf32>
    %301 = arith.subf %300, %299 : vector<2x8x1xf32>
    %302 = arith.mulf %298, %301 : vector<2x8x1xf32>
    %303 = vector.broadcast %302 : vector<2x8x1xf32> to vector<2x8x16xf32>
    %304 = arith.mulf %295, %303 : vector<2x8x16xf32>
    %305 = arith.truncf %304 : vector<2x8x16xf32> to vector<2x8x16xbf16>
    %306 = vector.extract_strided_slice %211 {offsets = [0, 0, 24], sizes = [2, 16, 8], strides = [1, 1, 1]} : vector<2x16x32xbf16> to vector<2x16x8xbf16>
    "tpu.trace_start"() <{level = 10 : i32, message = "bqk,bkd->bqd"}> : () -> ()
    %cst_109 = arith.constant dense<0.000000e+00> : vector<2x8x8xf32>
    %307 = tpu.matmul %305, %306, %cst_109 {dimension_numbers = #tpu.dot_dimension_numbers<[2], [1], [1], [2], [0, 0, 0, 1, 1, 2], [0], [0]>} : vector<2x8x16xbf16>, vector<2x16x8xbf16>, vector<2x8x8xf32> -> vector<2x8x8xf32>
    "tpu.trace_stop"() : () -> ()
    %308 = vector.shape_cast %307 : vector<2x8x8xf32> to vector<16x8xf32>
    %309 = arith.truncf %308 : vector<16x8xf32> to vector<16x8xbf16>
    %c24_110 = arith.constant 24 : index
    %c0_111 = arith.constant 0 : index
    %310 = vector.load %arg13[%c24_110, %c0_111] : memref<32x32xbf16, #tpu.memory_space<vmem>>, vector<8x32xbf16>
    %cst_112 = arith.constant dense<0.000000e+00> : vector<16x32xf32>
    %311 = tpu.matmul %309, %310, %cst_112 {dimension_numbers = #tpu.dot_dimension_numbers<[1], [0], [0], [1], [0, 0, 1, 1], [], []>} : vector<16x8xbf16>, vector<8x32xbf16>, vector<16x32xf32> -> vector<16x32xf32>
    %312 = arith.addf %287, %311 : vector<16x32xf32>
    %313 = vector.broadcast %203 : vector<1x32xf32> to vector<16x32xf32>
    %314 = arith.addf %312, %313 : vector<16x32xf32>
    %315 = arith.addf %158, %314 : vector<16x32xf32>
    %c4_113 = arith.constant 4 : index
    %c0_114 = arith.constant 0 : index
    %316 = vector.load %arg5[%c4_113, %c0_114] : memref<6x32xf32, #tpu.memory_space<vmem>>, vector<1x32xf32>
    %c5_115 = arith.constant 5 : index
    %c0_116 = arith.constant 0 : index
    %317 = vector.load %arg5[%c5_115, %c0_116] : memref<6x32xf32, #tpu.memory_space<vmem>>, vector<1x32xf32>
    %cst_117 = arith.constant dense<0.000000e+00> : vector<16xf32>
    %318 = vector.multi_reduction <add>, %315, %cst_117 [1] : vector<16x32xf32> to vector<16xf32>
    %319 = vector.shape_cast %318 : vector<16xf32> to vector<16x1xf32>
    %cst_118 = arith.constant 3.200000e+01 : f32
    %320 = vector.broadcast %cst_118 : f32 to vector<16x1xf32>
    %321 = arith.divf %319, %320 : vector<16x1xf32>
    %322 = vector.broadcast %321 : vector<16x1xf32> to vector<16x32xf32>
    %323 = arith.subf %315, %322 : vector<16x32xf32>
    %324 = arith.mulf %323, %323 : vector<16x32xf32>
    %cst_119 = arith.constant dense<0.000000e+00> : vector<16xf32>
    %325 = vector.multi_reduction <add>, %324, %cst_119 [1] : vector<16x32xf32> to vector<16xf32>
    %326 = vector.shape_cast %325 : vector<16xf32> to vector<16x1xf32>
    %cst_120 = arith.constant 3.200000e+01 : f32
    %327 = vector.broadcast %cst_120 : f32 to vector<16x1xf32>
    %328 = arith.divf %326, %327 : vector<16x1xf32>
    %329 = vector.broadcast %321 : vector<16x1xf32> to vector<16x32xf32>
    %330 = arith.subf %315, %329 : vector<16x32xf32>
    %cst_121 = arith.constant 9.99999974E-6 : f32
    %331 = vector.broadcast %cst_121 : f32 to vector<16x1xf32>
    %332 = arith.addf %328, %331 : vector<16x1xf32>
    %333 = math.rsqrt %332 : vector<16x1xf32>
    %334 = vector.broadcast %333 : vector<16x1xf32> to vector<16x32xf32>
    %335 = arith.mulf %330, %334 : vector<16x32xf32>
    %336 = vector.broadcast %316 : vector<1x32xf32> to vector<16x32xf32>
    %337 = arith.mulf %335, %336 : vector<16x32xf32>
    %338 = vector.broadcast %317 : vector<1x32xf32> to vector<16x32xf32>
    %339 = arith.addf %337, %338 : vector<16x32xf32>
    %340 = arith.truncf %339 : vector<16x32xf32> to vector<16x32xbf16>
    %c0_122 = arith.constant 0 : index
    %c0_123 = arith.constant 0 : index
    %341 = vector.load %arg14[%c0_122, %c0_123] : memref<32x128xbf16, #tpu.memory_space<vmem>>, vector<32x128xbf16>
    %cst_124 = arith.constant dense<0.000000e+00> : vector<16x128xf32>
    %342 = tpu.matmul %340, %341, %cst_124 {dimension_numbers = #tpu.dot_dimension_numbers<[1], [0], [0], [1], [0, 0, 1, 1], [], []>} : vector<16x32xbf16>, vector<32x128xbf16>, vector<16x128xf32> -> vector<16x128xf32>
    %c0_125 = arith.constant 0 : index
    %c0_126 = arith.constant 0 : index
    %343 = vector.load %arg15[%c0_125, %c0_126] : memref<1x128xf32, #tpu.memory_space<vmem>>, vector<1x128xf32>
    %344 = vector.broadcast %343 : vector<1x128xf32> to vector<16x128xf32>
    %345 = arith.addf %342, %344 : vector<16x128xf32>
    %cst_127 = arith.constant 0.000000e+00 : f32
    %346 = vector.broadcast %cst_127 : f32 to vector<16x128xf32>
    %347 = arith.cmpf oge, %345, %346 : vector<16x128xf32>
    %cst_128 = arith.constant 0.00999999977 : f32
    %348 = vector.broadcast %cst_128 : f32 to vector<16x128xf32>
    %349 = arith.mulf %348, %345 : vector<16x128xf32>
    %350 = arith.select %347, %345, %349 : vector<16x128xi1>, vector<16x128xf32>
    %351 = arith.truncf %350 : vector<16x128xf32> to vector<16x128xbf16>
    %c0_129 = arith.constant 0 : index
    %c0_130 = arith.constant 0 : index
    %352 = vector.load %arg16[%c0_129, %c0_130] : memref<128x32xbf16, #tpu.memory_space<vmem>>, vector<128x32xbf16>
    %cst_131 = arith.constant dense<0.000000e+00> : vector<16x32xf32>
    %353 = tpu.matmul %351, %352, %cst_131 {dimension_numbers = #tpu.dot_dimension_numbers<[1], [0], [0], [1], [0, 0, 1, 1], [], []>} : vector<16x128xbf16>, vector<128x32xbf16>, vector<16x32xf32> -> vector<16x32xf32>
    %354 = arith.addf %315, %353 : vector<16x32xf32>
    %c0_132 = arith.constant 0 : index
    %c0_133 = arith.constant 0 : index
    %355 = vector.load %arg17[%c0_132, %c0_133] : memref<1x32xf32, #tpu.memory_space<vmem>>, vector<1x32xf32>
    %356 = vector.broadcast %355 : vector<1x32xf32> to vector<16x32xf32>
    %357 = arith.addf %354, %356 : vector<16x32xf32>
    %c0_134 = arith.constant 0 : index
    %c0_135 = arith.constant 0 : index
    %358 = vector.load %arg18[%c0_134, %c0_135] : memref<16x32xf32, #tpu.memory_space<vmem>>, vector<16x32xf32>
    tpu.vector_store %arg18[%c0_134, %c0_135], %357 {strides = array<i32>} : memref<16x32xf32, #tpu.memory_space<vmem>>, vector<16x32xf32>,
    return
  }
  func.func @transform_0(%arg0: i32) -> (i32, i32) {
    %c0_i32 = arith.constant 0 : i32
    %c0_i32_0 = arith.constant 0 : i32
    return %arg0, %c0_i32 : i32, i32
  }
  func.func @transform_1(%arg0: i32) -> (i32, i32) {
    %c0_i32 = arith.constant 0 : i32
    %c0_i32_0 = arith.constant 0 : i32
    return %arg0, %c0_i32 : i32, i32
  }
  func.func @transform_2(%arg0: i32) -> (i32, i32) {
    %c0_i32 = arith.constant 0 : i32
    %c0_i32_0 = arith.constant 0 : i32
    return %arg0, %c0_i32 : i32, i32
  }
  func.func @transform_3(%arg0: i32) -> (i32, i32) {
    %c0_i32 = arith.constant 0 : i32
    %c0_i32_0 = arith.constant 0 : i32
    return %arg0, %c0_i32 : i32, i32
  }
  func.func @transform_4(%arg0: i32) -> (i32, i32) {
    %c0_i32 = arith.constant 0 : i32
    %c0_i32_0 = arith.constant 0 : i32
    %c0_i32_1 = arith.constant 0 : i32
    return %c0_i32, %c0_i32_0 : i32, i32
  }
  func.func @transform_5(%arg0: i32) -> (i32, i32) {
    %c0_i32 = arith.constant 0 : i32
    %c0_i32_0 = arith.constant 0 : i32
    %c0_i32_1 = arith.constant 0 : i32
    return %c0_i32, %c0_i32_0 : i32, i32
  }
  func.func @transform_6(%arg0: i32) -> (i32, i32) {
    %c0_i32 = arith.constant 0 : i32
    %c0_i32_0 = arith.constant 0 : i32
    %c0_i32_1 = arith.constant 0 : i32
    return %c0_i32, %c0_i32_0 : i32, i32
  }
  func.func @transform_7(%arg0: i32) -> (i32, i32) {
    %c0_i32 = arith.constant 0 : i32
    %c0_i32_0 = arith.constant 0 : i32
    %c0_i32_1 = arith.constant 0 : i32
    return %c0_i32, %c0_i32_0 : i32, i32
  }
  func.func @transform_8(%arg0: i32) -> (i32, i32) {
    %c0_i32 = arith.constant 0 : i32
    %c0_i32_0 = arith.constant 0 : i32
    %c0_i32_1 = arith.constant 0 : i32
    return %c0_i32, %c0_i32_0 : i32, i32
  }
  func.func @transform_9(%arg0: i32) -> (i32, i32) {
    %c0_i32 = arith.constant 0 : i32
    %c0_i32_0 = arith.constant 0 : i32
    %c0_i32_1 = arith.constant 0 : i32
    return %c0_i32, %c0_i32_0 : i32, i32
  }
  func.func @transform_10(%arg0: i32) -> (i32, i32) {
    %c0_i32 = arith.constant 0 : i32
    %c0_i32_0 = arith.constant 0 : i32
    %c0_i32_1 = arith.constant 0 : i32
    return %c0_i32, %c0_i32_0 : i32, i32
  }
  func.func @transform_11(%arg0: i32) -> (i32, i32) {
    %c0_i32 = arith.constant 0 : i32
    %c0_i32_0 = arith.constant 0 : i32
    %c0_i32_1 = arith.constant 0 : i32
    return %c0_i32, %c0_i32_0 : i32, i32
  }
  func.func @transform_12(%arg0: i32) -> (i32, i32) {
    %c0_i32 = arith.constant 0 : i32
    %c0_i32_0 = arith.constant 0 : i32
    %c0_i32_1 = arith.constant 0 : i32
    return %c0_i32, %c0_i32_0 : i32, i32
  }
  func.func @transform_13(%arg0: i32) -> (i32, i32) {
    %c0_i32 = arith.constant 0 : i32
    %c0_i32_0 = arith.constant 0 : i32
    %c0_i32_1 = arith.constant 0 : i32
    return %c0_i32, %c0_i32_0 : i32, i32
  }
  func.func @transform_14(%arg0: i32) -> (i32, i32) {
    %c0_i32 = arith.constant 0 : i32
    %c0_i32_0 = arith.constant 0 : i32
    %c0_i32_1 = arith.constant 0 : i32
    return %c0_i32, %c0_i32_0 : i32, i32
  }
  func.func @transform_15(%arg0: i32) -> (i32, i32) {
    %c0_i32 = arith.constant 0 : i32
    %c0_i32_0 = arith.constant 0 : i32
    %c0_i32_1 = arith.constant 0 : i32
    return %c0_i32, %c0_i32_0 : i32, i32
  }
  func.func @transform_16(%arg0: i32) -> (i32, i32) {
    %c0_i32 = arith.constant 0 : i32
    %c0_i32_0 = arith.constant 0 : i32
    %c0_i32_1 = arith.constant 0 : i32
    return %c0_i32, %c0_i32_0 : i32, i32
  }
  func.func @transform_17(%arg0: i32) -> (i32, i32) {
    %c0_i32 = arith.constant 0 : i32
    %c0_i32_0 = arith.constant 0 : i32
    return %arg0, %c0_i32 : i32, i32
  }
}

</mosaic_0001>

<llo_original>
// kernel: tpu_custom_call.1
$region0: #{tpu_custom_call.1}
  #allocation0 [shape = 'u32[]', space=smem, size = 0x4, offset = 0x4, fixed_abs, tag = 'smem constant byte address 0x4 - core index']
  #allocation1 [shape = 'u32[72,128]{1,0:T(1,128)}', space=vmem, size = 0x9000, scoped, tag = 'internal scratch']
  %s0 = inlined_call_operand.vmem [shape: f32[16,32], index: 0, kind: input, shape index: {}]
  %s1 = inlined_call_operand.vmem [shape: f32[32,32], index: 1, kind: input, shape index: {}]
  %s2 = inlined_call_operand.hbm [shape: f32[16,32], index: 2, kind: input, shape index: {}]
  %s3 = inlined_call_operand.vmem [shape: f32[32,32], index: 3, kind: input, shape index: {}]
  %s4 = inlined_call_operand.hbm [shape: f32[6,32], index: 4, kind: input, shape index: {}]
  %s5 = inlined_call_operand.hbm [shape: f32[8,32], index: 5, kind: input, shape index: {}]
  %s6 = inlined_call_operand.hbm [shape: bf16[32,64], index: 6, kind: input, shape index: {}]
  %s7 = inlined_call_operand.hbm [shape: bf16[32,32], index: 7, kind: input, shape index: {}]
  %s8 = inlined_call_operand.hbm [shape: bf16[32,32], index: 8, kind: input, shape index: {}]
  %s9 = inlined_call_operand.hbm [shape: bf16[32,32], index: 9, kind: input, shape index: {}]
  %s10 = inlined_call_operand.hbm [shape: bf16[32,32], index: 10, kind: input, shape index: {}]
  %s11 = inlined_call_operand.hbm [shape: bf16[32,32], index: 11, kind: input, shape index: {}]
  %s12 = inlined_call_operand.hbm [shape: bf16[32,32], index: 12, kind: input, shape index: {}]
  %s13 = inlined_call_operand.hbm [shape: bf16[32,128], index: 13, kind: input, shape index: {}]
  %s14 = inlined_call_operand.vmem [shape: f32[1,128], index: 14, kind: input, shape index: {}]
  %s15 = inlined_call_operand.vmem [shape: bf16[128,32], index: 15, kind: input, shape index: {}]
  %s16 = inlined_call_operand.vmem [shape: f32[1,32], index: 16, kind: input, shape index: {}]
  %s17 = inlined_call_operand.hbm [shape: f32[16,32], index: 17, kind: output, shape index: {}]
  %s18 = sld [smem:[#allocation0]]
  $region122: #{tpu_custom_call.1} parent=0
    _
  %s20 = ssub.s32 1, %s18
  %s21 = scalar_select 0, %s20, %s18
  $region1: #{tpu_custom_call.1} parent=0
    #allocation2 [shape = 'u8[8192]{0}', space=vmem, size = 0x2000, scoped, tag = 'input window, operand 2, single buffered']
    #allocation3 [shape = 's32[1]{0}', space=sflag, size = 0x4, scoped, tag = 'scoped memory for tpu_custom_call.1']
    #allocation4 [shape = 's32[1]{0}', space=sflag, size = 0x4, scoped, tag = 'scoped memory for tpu_custom_call.1']
    #allocation5 [shape = 'u8[4096]{0}', space=vmem, size = 0x1000, scoped, tag = 'input window, operand 4, single buffered']
    #allocation6 [shape = 's32[1]{0}', space=sflag, size = 0x4, scoped, tag = 'scoped memory for tpu_custom_call.1']
    #allocation7 [shape = 'u8[4096]{0}', space=vmem, size = 0x1000, scoped, tag = 'input window, operand 5, single buffered']
    #allocation8 [shape = 'u8[8192]{0}', space=vmem, size = 0x2000, scoped, tag = 'input window, operand 6, single buffered']
    #allocation9 [shape = 's32[1]{0}', space=sflag, size = 0x4, scoped, tag = 'scoped memory for tpu_custom_call.1']
    #allocation10 [shape = 'u8[8192]{0}', space=vmem, size = 0x2000, scoped, tag = 'input window, operand 7, single buffered']
    #allocation11 [shape = 'u8[8192]{0}', space=vmem, size = 0x2000, scoped, tag = 'input window, operand 8, single buffered']
    #allocation12 [shape = 's32[1]{0}', space=sflag, size = 0x4, scoped, tag = 'scoped memory for tpu_custom_call.1']
    #allocation13 [shape = 'u8[8192]{0}', space=vmem, size = 0x2000, scoped, tag = 'input window, operand 9, single buffered']
    #allocation14 [shape = 'u8[8192]{0}', space=vmem, size = 0x2000, scoped, tag = 'input window, operand 10, single buffered']
    #allocation15 [shape = 's32[1]{0}', space=sflag, size = 0x4, scoped, tag = 'scoped memory for tpu_custom_call.1']
    #allocation16 [shape = 'u8[8192]{0}', space=vmem, size = 0x2000, scoped, tag = 'input window, operand 11, single buffered']
    #allocation17 [shape = 'u8[8192]{0}', space=vmem, size = 0x2000, scoped, tag = 'input window, operand 12, single buffered']
    #allocation18 [shape = 's32[1]{0}', space=sflag, size = 0x4, scoped, tag = 'scoped memory for tpu_custom_call.1']
    #allocation19 [shape = 'u8[8192]{0}', space=vmem, size = 0x2000, scoped, tag = 'input window, operand 13, single buffered']
    #allocation20 [shape = 'u8[8192]{0}', space=vmem, size = 0x2000, scoped, tag = 'output window, operand 0, single buffered']
    %22 = vsyncpa [#allocation3], 0
    %23 = vsyncpa [#allocation6], 0
    %24 = vsyncpa [#allocation9], 0
    %25 = vsyncpa [#allocation12], 0
    %26 = vsyncpa [#allocation15], 0
    %27 = vsyncpa [#allocation18], 0
    %28 = vsyncpa [#allocation4], 0
    // Predicated region
    $region2: #{tpu_custom_call.1} parent=1 // pred_check
      _
    $region3: #{tpu_custom_call.1} parent=1 // pred_check_branch
      %30 = sbr.rel (0) target = $region5
    $region4: #{tpu_custom_call.1} parent=1 // pred_region
      _
    $region5: #{tpu_custom_call.1} parent=1 // pred_fallthru
      _
    // Predicated region
    $region6: #{tpu_custom_call.1} parent=1 // pred_check
      _
    $region7: #{tpu_custom_call.1} parent=1 // pred_check_branch
      %32 = sbr.rel (0) target = $region9
    $region8: #{tpu_custom_call.1} parent=1 // pred_region
      _
    $region9: #{tpu_custom_call.1} parent=1 // pred_fallthru
      _
    // Predicated region
    $region10: #{tpu_custom_call.1} parent=1 // pred_check
      _
    $region11: #{tpu_custom_call.1} parent=1 // pred_check_branch
      %34 = sbr.rel (0) target = $region13
    $region12: #{tpu_custom_call.1} parent=1 // pred_region
      %36 = vsyncadd [#allocation3], 0
      %s37 = sshll.u32 %s2, 4
      %s38 = int_to_ptr.hbm [resolvable:$true] %s37
      %s39 = sshll.u32 [#allocation2], 4
      %s40 = int_to_ptr.vmem [resolvable:$true] %s39
      %45 = dma.hbm_to_vmem [thread:$0]  %s38, 256, %s40, [#allocation3], 128, 128, 8
    $region13: #{tpu_custom_call.1} parent=1 // pred_fallthru
      _
    // Predicated region
    $region14: #{tpu_custom_call.1} parent=1 // pred_check
      _
    $region15: #{tpu_custom_call.1} parent=1 // pred_check_branch
      %47 = sbr.rel (0) target = $region17
    $region16: #{tpu_custom_call.1} parent=1 // pred_region
      _
    $region17: #{tpu_custom_call.1} parent=1 // pred_fallthru
      _
    // Predicated region
    $region18: #{tpu_custom_call.1} parent=1 // pred_check
      _
    $region19: #{tpu_custom_call.1} parent=1 // pred_check_branch
      %49 = sbr.rel (0) target = $region21
    $region20: #{tpu_custom_call.1} parent=1 // pred_region
      %51 = vsyncadd [#allocation6], 0
      %s53 = sshll.u32 %s4, 4
      %s54 = int_to_ptr.hbm [resolvable:$true] %s53
      %s55 = sshll.u32 [#allocation5], 4
      %s56 = int_to_ptr.vmem [resolvable:$true] %s55
      %58 = dma.hbm_to_vmem [thread:$0]  %s54, 128, %s56, [#allocation6]
    $region21: #{tpu_custom_call.1} parent=1 // pred_fallthru
      _
    // Predicated region
    $region22: #{tpu_custom_call.1} parent=1 // pred_check
      _
    $region23: #{tpu_custom_call.1} parent=1 // pred_check_branch
      %60 = sbr.rel (0) target = $region25
    $region24: #{tpu_custom_call.1} parent=1 // pred_region
      %62 = vsyncadd [#allocation6], 0
      %s64 = sshll.u32 %s5, 4
      %s65 = int_to_ptr.hbm [resolvable:$true] %s64
      %s66 = sshll.u32 [#allocation7], 4
      %s67 = int_to_ptr.vmem [resolvable:$true] %s66
      %69 = dma.hbm_to_vmem [thread:$0]  %s65, 128, %s67, [#allocation6]
    $region25: #{tpu_custom_call.1} parent=1 // pred_fallthru
      _
    // Predicated region
    $region26: #{tpu_custom_call.1} parent=1 // pred_check
      _
    $region27: #{tpu_custom_call.1} parent=1 // pred_check_branch
      %71 = sbr.rel (0) target = $region29
    $region28: #{tpu_custom_call.1} parent=1 // pred_region
      %73 = vsyncadd [#allocation9], 0
      %s74 = sshll.u32 %s6, 4
      %s75 = int_to_ptr.hbm [resolvable:$true] %s74
      %s76 = sshll.u32 [#allocation8], 4
      %s77 = int_to_ptr.vmem [resolvable:$true] %s76
      %82 = dma.hbm_to_vmem [thread:$0]  %s75, 256, %s77, [#allocation9], 64, 64, 4
    $region29: #{tpu_custom_call.1} parent=1 // pred_fallthru
      _
    // Predicated region
    $region30: #{tpu_custom_call.1} parent=1 // pred_check
      _
    $region31: #{tpu_custom_call.1} parent=1 // pred_check_branch
      %84 = sbr.rel (0) target = $region33
    $region32: #{tpu_custom_call.1} parent=1 // pred_region
      %86 = vsyncadd [#allocation9], 0
      %s87 = sshll.u32 %s7, 4
      %s88 = int_to_ptr.hbm [resolvable:$true] %s87
      %s89 = sshll.u32 [#allocation10], 4
      %s90 = int_to_ptr.vmem [resolvable:$true] %s89
      %95 = dma.hbm_to_vmem [thread:$0]  %s88, 256, %s90, [#allocation9], 64, 64, 4
    $region33: #{tpu_custom_call.1} parent=1 // pred_fallthru
      _
    // Predicated region
    $region34: #{tpu_custom_call.1} parent=1 // pred_check
      _
    $region35: #{tpu_custom_call.1} parent=1 // pred_check_branch
      %97 = sbr.rel (0) target = $region37
    $region36: #{tpu_custom_call.1} parent=1 // pred_region
      %99 = vsyncadd [#allocation12], 0
      %s100 = sshll.u32 %s8, 4
      %s101 = int_to_ptr.hbm [resolvable:$true] %s100
      %s102 = sshll.u32 [#allocation11], 4
      %s103 = int_to_ptr.vmem [resolvable:$true] %s102
      %108 = dma.hbm_to_vmem [thread:$0]  %s101, 256, %s103, [#allocation12], 64, 64, 4
    $region37: #{tpu_custom_call.1} parent=1 // pred_fallthru
      _
    // Predicated region
    $region38: #{tpu_custom_call.1} parent=1 // pred_check
      _
    $region39: #{tpu_custom_call.1} parent=1 // pred_check_branch
      %110 = sbr.rel (0) target = $region41
    $region40: #{tpu_custom_call.1} parent=1 // pred_region
      %112 = vsyncadd [#allocation12], 0
      %s113 = sshll.u32 %s9, 4
      %s114 = int_to_ptr.hbm [resolvable:$true] %s113
      %s115 = sshll.u32 [#allocation13], 4
      %s116 = int_to_ptr.vmem [resolvable:$true] %s115
      %121 = dma.hbm_to_vmem [thread:$0]  %s114, 256, %s116, [#allocation12], 64, 64, 4
    $region41: #{tpu_custom_call.1} parent=1 // pred_fallthru
      _
    // Predicated region
    $region42: #{tpu_custom_call.1} parent=1 // pred_check
      _
    $region43: #{tpu_custom_call.1} parent=1 // pred_check_branch
      %123 = sbr.rel (0) target = $region45
    $region44: #{tpu_custom_call.1} parent=1 // pred_region
      %125 = vsyncadd [#allocation15], 0
      %s126 = sshll.u32 %s10, 4
      %s127 = int_to_ptr.hbm [resolvable:$true] %s126
      %s128 = sshll.u32 [#allocation14], 4
      %s129 = int_to_ptr.vmem [resolvable:$true] %s128
      %134 = dma.hbm_to_vmem [thread:$0]  %s127, 256, %s129, [#allocation15], 64, 64, 4
    $region45: #{tpu_custom_call.1} parent=1 // pred_fallthru
      _
    // Predicated region
    $region46: #{tpu_custom_call.1} parent=1 // pred_check
      _
    $region47: #{tpu_custom_call.1} parent=1 // pred_check_branch
      %136 = sbr.rel (0) target = $region49
    $region48: #{tpu_custom_call.1} parent=1 // pred_region
      %138 = vsyncadd [#allocation15], 0
      %s139 = sshll.u32 %s11, 4
      %s140 = int_to_ptr.hbm [resolvable:$true] %s139
      %s141 = sshll.u32 [#allocation16], 4
      %s142 = int_to_ptr.vmem [resolvable:$true] %s141
      %147 = dma.hbm_to_vmem [thread:$0]  %s140, 256, %s142, [#allocation15], 64, 64, 4
    $region49: #{tpu_custom_call.1} parent=1 // pred_fallthru
      _
    // Predicated region
    $region50: #{tpu_custom_call.1} parent=1 // pred_check
      _
    $region51: #{tpu_custom_call.1} parent=1 // pred_check_branch
      %149 = sbr.rel (0) target = $region53
    $region52: #{tpu_custom_call.1} parent=1 // pred_region
      %151 = vsyncadd [#allocation18], 0
      %s152 = sshll.u32 %s12, 4
      %s153 = int_to_ptr.hbm [resolvable:$true] %s152
      %s154 = sshll.u32 [#allocation17], 4
      %s155 = int_to_ptr.vmem [resolvable:$true] %s154
      %160 = dma.hbm_to_vmem [thread:$0]  %s153, 256, %s155, [#allocation18], 64, 64, 4
    $region53: #{tpu_custom_call.1} parent=1 // pred_fallthru
      _
    // Predicated region
    $region54: #{tpu_custom_call.1} parent=1 // pred_check
      _
    $region55: #{tpu_custom_call.1} parent=1 // pred_check_branch
      %162 = sbr.rel (0) target = $region57
    $region56: #{tpu_custom_call.1} parent=1 // pred_region
      %164 = vsyncadd [#allocation18], 0
      %s165 = sshll.u32 %s13, 4
      %s166 = int_to_ptr.hbm [resolvable:$true] %s165
      %s167 = sshll.u32 [#allocation19], 4
      %s168 = int_to_ptr.vmem [resolvable:$true] %s167
      %173 = dma.hbm_to_vmem [thread:$0]  %s166, 256, %s168, [#allocation18], 64, 64, 4
    $region57: #{tpu_custom_call.1} parent=1 // pred_fallthru
      _
    // Predicated region
    $region58: #{tpu_custom_call.1} parent=1 // pred_check
      _
    $region59: #{tpu_custom_call.1} parent=1 // pred_check_branch
      %175 = sbr.rel (0) target = $region61
    $region60: #{tpu_custom_call.1} parent=1 // pred_region
      _
    $region61: #{tpu_custom_call.1} parent=1 // pred_fallthru
      _
    // Predicated region
    $region62: #{tpu_custom_call.1} parent=1 // pred_check
      _
    $region63: #{tpu_custom_call.1} parent=1 // pred_check_branch
      %177 = sbr.rel (0) target = $region65
    $region64: #{tpu_custom_call.1} parent=1 // pred_region
      _
    $region65: #{tpu_custom_call.1} parent=1 // pred_fallthru
      _
    // Predicated region
    $region66: #{tpu_custom_call.1} parent=1 // pred_check
      _
    $region67: #{tpu_custom_call.1} parent=1 // pred_check_branch
      %179 = sbr.rel (0) target = $region69
    $region68: #{tpu_custom_call.1} parent=1 // pred_region
      _
    $region69: #{tpu_custom_call.1} parent=1 // pred_fallthru
      _
    // Predicated region
    $region70: #{tpu_custom_call.1} parent=1 // pred_check
      _
    $region71: #{tpu_custom_call.1} parent=1 // pred_check_branch
      %181 = sbr.rel (0) target = $region73
    $region72: #{tpu_custom_call.1} parent=1 // pred_region
      %183 = dma.done [#allocation3], 256
    $region73: #{tpu_custom_call.1} parent=1 // pred_fallthru
      _
    // Predicated region
    $region74: #{tpu_custom_call.1} parent=1 // pred_check
      _
    $region75: #{tpu_custom_call.1} parent=1 // pred_check_branch
      %185 = sbr.rel (0) target = $region77
    $region76: #{tpu_custom_call.1} parent=1 // pred_region
      %187 = dma.done [#allocation6], 128
    $region77: #{tpu_custom_call.1} parent=1 // pred_fallthru
      _
    // Predicated region
    $region78: #{tpu_custom_call.1} parent=1 // pred_check
      _
    $region79: #{tpu_custom_call.1} parent=1 // pred_check_branch
      %189 = sbr.rel (0) target = $region81
    $region80: #{tpu_custom_call.1} parent=1 // pred_region
      %191 = dma.done [#allocation6], 128
    $region81: #{tpu_custom_call.1} parent=1 // pred_fallthru
      _
    // Predicated region
    $region82: #{tpu_custom_call.1} parent=1 // pred_check
      _
    $region83: #{tpu_custom_call.1} parent=1 // pred_check_branch
      %193 = sbr.rel (0) target = $region85
    $region84: #{tpu_custom_call.1} parent=1 // pred_region
      %195 = dma.done [#allocation9], 256
    $region85: #{tpu_custom_call.1} parent=1 // pred_fallthru
      _
    // Predicated region
    $region86: #{tpu_custom_call.1} parent=1 // pred_check
      _
    $region87: #{tpu_custom_call.1} parent=1 // pred_check_branch
      %197 = sbr.rel (0) target = $region89
    $region88: #{tpu_custom_call.1} parent=1 // pred_region
      %199 = dma.done [#allocation9], 256
    $region89: #{tpu_custom_call.1} parent=1 // pred_fallthru
      _
    // Predicated region
    $region90: #{tpu_custom_call.1} parent=1 // pred_check
      _
    $region91: #{tpu_custom_call.1} parent=1 // pred_check_branch
      %201 = sbr.rel (0) target = $region93
    $region92: #{tpu_custom_call.1} parent=1 // pred_region
      %203 = dma.done [#allocation12], 256
    $region93: #{tpu_custom_call.1} parent=1 // pred_fallthru
      _
    // Predicated region
    $region94: #{tpu_custom_call.1} parent=1 // pred_check
      _
    $region95: #{tpu_custom_call.1} parent=1 // pred_check_branch
      %205 = sbr.rel (0) target = $region97
    $region96: #{tpu_custom_call.1} parent=1 // pred_region
      %207 = dma.done [#allocation12], 256
    $region97: #{tpu_custom_call.1} parent=1 // pred_fallthru
      _
    // Predicated region
    $region98: #{tpu_custom_call.1} parent=1 // pred_check
      _
    $region99: #{tpu_custom_call.1} parent=1 // pred_check_branch
      %209 = sbr.rel (0) target = $region101
    $region100: #{tpu_custom_call.1} parent=1 // pred_region
      %211 = dma.done [#allocation15], 256
    $region101: #{tpu_custom_call.1} parent=1 // pred_fallthru
      _
    // Predicated region
    $region102: #{tpu_custom_call.1} parent=1 // pred_check
      _
    $region103: #{tpu_custom_call.1} parent=1 // pred_check_branch
      %213 = sbr.rel (0) target = $region105
    $region104: #{tpu_custom_call.1} parent=1 // pred_region
      %215 = dma.done [#allocation15], 256
    $region105: #{tpu_custom_call.1} parent=1 // pred_fallthru
      _
    // Predicated region
    $region106: #{tpu_custom_call.1} parent=1 // pred_check
      _
    $region107: #{tpu_custom_call.1} parent=1 // pred_check_branch
      %217 = sbr.rel (0) target = $region109
    $region108: #{tpu_custom_call.1} parent=1 // pred_region
      %219 = dma.done [#allocation18], 256
    $region109: #{tpu_custom_call.1} parent=1 // pred_fallthru
      _
    // Predicated region
    $region110: #{tpu_custom_call.1} parent=1 // pred_check
      _
    $region111: #{tpu_custom_call.1} parent=1 // pred_check_branch
      %221 = sbr.rel (0) target = $region113
    $region112: #{tpu_custom_call.1} parent=1 // pred_region
      %223 = dma.done [#allocation18], 256
    $region113: #{tpu_custom_call.1} parent=1 // pred_fallthru
      _
    %v225 = vld [vmem:[%s0] sm:$0xff]
    %v226 = vld [vmem:[%s0 + $0x8] sm:$0xff]
    %v227 = vld [vmem:[%s1] sm:$0xff]
    %v228 = vld [vmem:[%s1 + $0x8] sm:$0xff]
    %v229 = vld [vmem:[%s1 + $0x10] sm:$0xff]
    %v230 = vld [vmem:[%s1 + $0x18] sm:$0xff]
    %v231 = vld [vmem:[#allocation2] sm:$0xff]
    %v232 = vld [vmem:[#allocation2 + $0x8] sm:$0xff]
    %v233 = vld [vmem:[%s3] sm:$0xff]
    %v234 = vld [vmem:[%s3 + $0x8] sm:$0xff]
    %v235 = vld [vmem:[%s3 + $0x10] sm:$0xff]
    %v236 = vld [vmem:[%s3 + $0x18] sm:$0xff]
    %v237 = vld [vmem:[#allocation5] sm:$0x1]
    %v238 = vld [vmem:[#allocation5 + $0x1] sm:$0x1]
    %vm239 = vcmask 261120
    %v240 = vsel %vm239, %v225, 0.0
    %241 = vadd.xlane.f32.xlu0 %v240
    %v242 = vpop.xlane.xlu0 %241
    %v243 = vsel %vm239, %v226, 0.0
    %244 = vadd.xlane.f32.xlu0 %v243
    %v245 = vpop.xlane.xlu0 %244
    %v246 = vrcp.pop 32.0
    %v247 = vmul.f32 32.0, %v246
    %v248 = vsub.f32 1.0, %v247
    %v249 = vmul.f32 %v246, %v248
    %v250 = vadd.f32 %v246, %v249
    %vm251 = vweird.f32 %v246
    %v252 = vsel %vm251, %v246, %v250
    %v253 = vmul.f32 %v242, %v252
    %v254 = vmul.f32 %v245, %v252
    %v255 = vsub.f32 %v225, %v253
    %v256 = vsub.f32 %v226, %v254
    %v257 = vmul.f32 %v255, %v255
    %v258 = vmul.f32 %v256, %v256
    %v259 = vsel %vm239, %v257, 0.0
    %260 = vadd.xlane.f32.xlu0 %v259
    %v261 = vpop.xlane.xlu0 %260
    %v262 = vsel %vm239, %v258, 0.0
    %263 = vadd.xlane.f32.xlu0 %v262
    %v264 = vpop.xlane.xlu0 %263
    %v265 = vmul.f32 %v261, %v252
    %v266 = vmul.f32 %v264, %v252
    %v267 = vadd.f32 %v265, 1e-05
    %v268 = vadd.f32 %v266, 1e-05
    %v269 = vrsqrt.pop %v267
    %v270 = vmul.f32 %v269, %v267
    %v271 = vmul.f32 %v270, %v269
    %v272 = vmul.f32 0.5, %v271
    %v273 = vsub.f32 1.5, %v272
    %v274 = vmul.f32 %v269, %v273
    %vm275 = vweird.f32 %v267
    %vm276 = vweird.f32 %v269
    %vm277 = vmor %vm275, %vm276
    %v278 = vsel %vm277, %v269, %v274
    %v279 = vrsqrt.pop %v268
    %v280 = vmul.f32 %v279, %v268
    %v281 = vmul.f32 %v280, %v279
    %v282 = vmul.f32 0.5, %v281
    %v283 = vsub.f32 1.5, %v282
    %v284 = vmul.f32 %v279, %v283
    %vm285 = vweird.f32 %v268
    %vm286 = vweird.f32 %v279
    %vm287 = vmor %vm285, %vm286
    %v288 = vsel %vm287, %v279, %v284
    %v289 = vmul.f32 %v255, %v278
    %v290 = vmul.f32 %v256, %v288
    %v291 = vperm.slane %v237, 0
    %v292 = vmul.f32 %v289, %v291
    %v293 = vmul.f32 %v290, %v291
    %v294 = vperm.slane %v238, 0
    %v295 = vadd.f32 %v292, %v294
    %v296 = vadd.f32 %v293, %v294
    %v297 = vadd.f32 %v295, %v231
    %v298 = vadd.f32 %v296, %v232
    %v299 = vpack.c.bf16 %v298, %v297
    %v300 = vld [vmem:[#allocation8] sm:$0xf]
    %v301 = vld [vmem:[#allocation8 + $0x4] sm:$0xf]
    %v302 = vld [vmem:[#allocation8 + $0x8] sm:$0xf]
    %v303 = vld [vmem:[#allocation8 + $0xc] sm:$0xf]
    %v308 = vunpack.c.l.b16 %v300
    %v309 = vunpack.c.l.b16 %v301
    %v310 = vunpack.c.l.b16 %v302
    %v311 = vunpack.c.l.b16 %v303
    %v312 = vpack.c.b16 %v309, %v308
    %v313 = vpack.c.b16 %v311, %v310
    %v317 = vsel %vm239, %v299, 0
    %319 = vmatpush.bf16.msra.mxu0 0
    %320 = vmatpush.bf16.msra.mxu0 0
    %321 = vmatpush.bf16.msra.mxu0 0
    %322 = vmatpush.bf16.msra.mxu0 0
    %323 = vmatpush.bf16.msra.mxu0 0
    %324 = vmatpush.bf16.msra.mxu0 0
    %325 = vmatpush.bf16.msra.mxu0 %v313
    %326 = vmatpush.bf16.msra.mxu0 %v312
    %327 = vmatmul.bf16.gmra.mxu0 %v317
    %v328 = vpop.f32.mrf.mxu0
    %v329 = vadd.f32 0.0, %v328
    %v330 = vpop.f32.mrf.mxu0
    %v331 = vadd.f32 0.0, %v330
    %332 = vdwg.mxu0
    %v333 = vld [vmem:[#allocation7] sm:$0x1]
    %v334 = vperm.slane %v333, 0
    %v335 = vadd.f32 %v329, %v334
    %v336 = vadd.f32 %v331, %v334
    %v337 = vld [vmem:[#allocation7 + $0x1] sm:$0x1]
    %v338 = vperm.slane %v337, 0
    %340 = vrot.lane.b32.xlu0 %v338, 32
    %v341 = vpop.permute.xlu0 %340
    %v343 = vadd.f32 %v329, %v341
    %v344 = vadd.f32 %v331, %v341
    %v345 = vpack.c.bf16 %v296, %v295
    %v346 = vld [vmem:[#allocation10] sm:$0xf]
    %v347 = vld [vmem:[#allocation10 + $0x4] sm:$0xf]
    %v348 = vld [vmem:[#allocation10 + $0x8] sm:$0xf]
    %v349 = vld [vmem:[#allocation10 + $0xc] sm:$0xf]
    %v350 = vld [vmem:[#allocation7 + $0x2] sm:$0x1]
    %v351 = vperm.slane %v350, 0
    %v356 = vunpack.c.l.b16 %v346
    %v357 = vunpack.c.l.b16 %v347
    %v358 = vunpack.c.l.b16 %v348
    %v359 = vunpack.c.l.b16 %v349
    %v360 = vpack.c.b16 %v357, %v356
    %v361 = vpack.c.b16 %v359, %v358
    %v365 = vsel %vm239, %v345, 0
    %367 = vmatpush.bf16.msra.mxu0 0
    %368 = vmatpush.bf16.msra.mxu0 0
    %369 = vmatpush.bf16.msra.mxu0 0
    %370 = vmatpush.bf16.msra.mxu0 0
    %371 = vmatpush.bf16.msra.mxu0 0
    %372 = vmatpush.bf16.msra.mxu0 0
    %373 = vmatpush.bf16.msra.mxu0 %v361
    %374 = vmatpush.bf16.msra.mxu0 %v360
    %375 = vmatmul.bf16.gmra.mxu0 %v365
    %v376 = vpop.f32.mrf.mxu0
    %v377 = vadd.f32 %v351, %v376
    %v378 = vpop.f32.mrf.mxu0
    %v379 = vadd.f32 %v351, %v378
    %380 = vdwg.mxu0
    %v381 = vld [vmem:[#allocation7 + $0x3] sm:$0x1]
    %v382 = vmul.f32 %v335, 0.35355338
    %v383 = vmul.f32 %v336, 0.35355338
    %v384 = vpack.c.bf16 %v382, %v382
    %v385 = vpack.c.bf16 %v383, %v383
    %v386 = vpack.c.bf16 %v343, %v343
    %v387 = vpack.c.bf16 %v344, %v344
    %v388 = vpack.c.bf16 %v377, %v377
    %v389 = vpack.c.bf16 %v379, %v379
    %v391 = vunpack.c.l.b16 %v386
    %v392 = vpack.c.b16 %v391, %v391
    %393 = vrot.lane.b32.xlu0 %v392, 96
    %v394 = vpop.permute.xlu0 %393
    %vm395 = vcmask 64512
    %v397 = vsel %vm395, %v384, 0
    %v400 = vsel %vm395, %v394, 0
    %402 = vmatpush.bf16.xpose.msra.mxu0 0
    %403 = vmatpush.bf16.xpose.msra.mxu0 0
    %404 = vmatpush.bf16.xpose.msra.mxu0 0
    %405 = vmatpush.bf16.xpose.msra.mxu0 0
    %406 = vmatpush.bf16.xpose.msra.mxu0 0
    %407 = vmatpush.bf16.xpose.msra.mxu0 0
    %408 = vmatpush.bf16.xpose.msra.mxu0 0
    %409 = vmatpush.bf16.xpose.msra.mxu0 %v400
    %410 = vmatmul.bf16.gmra.mxu0 %v397
    %v411 = vpop.f32.mrf.mxu0
    %v412 = vadd.f32 0.0, %v411
    %v413 = vpop.f32.mrf.mxu0
    %414 = vdwg.mxu0
    %v416 = vunpack.c.l.b16 %v387
    %v417 = vpack.c.b16 %v416, %v416
    %418 = vrot.lane.b32.xlu0 %v417, 96
    %v419 = vpop.permute.xlu0 %418
    %v421 = vsel %vm395, %v385, 0
    %v424 = vsel %vm395, %v419, 0
    %426 = vmatpush.bf16.xpose.msra.mxu0 0
    %427 = vmatpush.bf16.xpose.msra.mxu0 0
    %428 = vmatpush.bf16.xpose.msra.mxu0 0
    %429 = vmatpush.bf16.xpose.msra.mxu0 0
    %430 = vmatpush.bf16.xpose.msra.mxu0 0
    %431 = vmatpush.bf16.xpose.msra.mxu0 0
    %432 = vmatpush.bf16.xpose.msra.mxu0 0
    %433 = vmatpush.bf16.xpose.msra.mxu0 %v424
    %434 = vmatmul.bf16.gmra.mxu0 %v421
    %v435 = vpop.f32.mrf.mxu0
    %v436 = vadd.f32 0.0, %v435
    %v437 = vpop.f32.mrf.mxu0
    %438 = vdwg.mxu0
    %v439 = vsel %vm395, %v412, -inf
    %440 = vmax.xlane.f32.xlu0 %v439
    %v441 = vpop.xlane.xlu0 %440
    %v442 = vsel %vm395, %v436, -inf
    %443 = vmax.xlane.f32.xlu0 %v442
    %v444 = vpop.xlane.xlu0 %443
    %v445 = vsub.f32 %v412, %v441
    %v446 = vsub.f32 %v436, %v444
    %v447 = vmul.f32 %v445, 1.442695
    %v448 = vpow.pop %v447
    %v449 = vmul.f32 %v446, 1.442695
    %v450 = vpow.pop %v449
    %v451 = vsel %vm395, %v448, 0.0
    %452 = vadd.xlane.f32.xlu0 %v451
    %v453 = vpop.xlane.xlu0 %452
    %v454 = vsel %vm395, %v450, 0.0
    %455 = vadd.xlane.f32.xlu0 %v454
    %v456 = vpop.xlane.xlu0 %455
    %v457 = vrcp.pop %v453
    %v458 = vrcp.pop %v456
    %v459 = vmul.f32 %v453, %v457
    %v460 = vmul.f32 %v456, %v458
    %v461 = vsub.f32 2.0, %v459
    %v462 = vsub.f32 2.0, %v460
    %v463 = vmul.f32 %v457, %v461
    %v464 = vmul.f32 %v458, %v462
    %v465 = vmul.f32 %v448, %v463
    %v466 = vmul.f32 %v450, %v464
    %v467 = vpack.c.bf16 %v465, %v465
    %v468 = vpack.c.bf16 %v466, %v466
    %v470 = vsel %vm395, %v467, 0
    %vm472 = vcmask 1043456
    %v474 = vsel %vm472, %v388, 0
    %476 = vmatpush.bf16.msra.mxu0 0
    %477 = vmatpush.bf16.msra.mxu0 0
    %478 = vmatpush.bf16.msra.mxu0 0
    %479 = vmatpush.bf16.msra.mxu0 0
    %480 = vmatpush.bf16.msra.mxu0 0
    %481 = vmatpush.bf16.msra.mxu0 0
    %482 = vmatpush.bf16.msra.mxu0 0
    %483 = vmatpush.bf16.msra.mxu0 %v474
    %484 = vmatmul.bf16.gmra.mxu0 %v470
    %v485 = vpop.f32.mrf.mxu0
    %v486 = vadd.f32 0.0, %v485
    %v487 = vpop.f32.mrf.mxu0
    %488 = vdwg.mxu0
    %v490 = vsel %vm395, %v468, 0
    %v493 = vsel %vm472, %v389, 0
    %495 = vmatpush.bf16.msra.mxu0 0
    %496 = vmatpush.bf16.msra.mxu0 0
    %497 = vmatpush.bf16.msra.mxu0 0
    %498 = vmatpush.bf16.msra.mxu0 0
    %499 = vmatpush.bf16.msra.mxu0 0
    %500 = vmatpush.bf16.msra.mxu0 0
    %501 = vmatpush.bf16.msra.mxu0 0
    %502 = vmatpush.bf16.msra.mxu0 %v493
    %503 = vmatmul.bf16.gmra.mxu0 %v490
    %v504 = vpop.f32.mrf.mxu0
    %v505 = vadd.f32 0.0, %v504
    %v506 = vpop.f32.mrf.mxu0
    %507 = vdwg.mxu0
    %v508 = vpack.c.bf16 %v505, %v486
    %v509 = vld [vmem:[#allocation11] sm:$0xf]
    %v511 = vunpack.c.l.b16 %v384
    %v512 = vpack.c.b16 %v511, %v511
    %513 = vrot.lane.b32.xlu0 %v512, 120
    %v514 = vpop.permute.xlu0 %513
    %515 = vrot.lane.b32.xlu0 %v392, 88
    %v516 = vpop.permute.xlu0 %515
    %v518 = vsel %vm395, %v514, 0
    %v521 = vsel %vm395, %v516, 0
    %523 = vmatpush.bf16.xpose.msra.mxu0 0
    %524 = vmatpush.bf16.xpose.msra.mxu0 0
    %525 = vmatpush.bf16.xpose.msra.mxu0 0
    %526 = vmatpush.bf16.xpose.msra.mxu0 0
    %527 = vmatpush.bf16.xpose.msra.mxu0 0
    %528 = vmatpush.bf16.xpose.msra.mxu0 0
    %529 = vmatpush.bf16.xpose.msra.mxu0 0
    %530 = vmatpush.bf16.xpose.msra.mxu0 %v521
    %531 = vmatmul.bf16.gmra.mxu0 %v518
    %v532 = vpop.f32.mrf.mxu0
    %v533 = vadd.f32 0.0, %v532
    %v534 = vpop.f32.mrf.mxu0
    %535 = vdwg.mxu0
    %v537 = vunpack.c.l.b16 %v385
    %v538 = vpack.c.b16 %v537, %v537
    %539 = vrot.lane.b32.xlu0 %v538, 120
    %v540 = vpop.permute.xlu0 %539
    %541 = vrot.lane.b32.xlu0 %v417, 88
    %v542 = vpop.permute.xlu0 %541
    %v544 = vsel %vm395, %v540, 0
    %v547 = vsel %vm395, %v542, 0
    %549 = vmatpush.bf16.xpose.msra.mxu0 0
    %550 = vmatpush.bf16.xpose.msra.mxu0 0
    %551 = vmatpush.bf16.xpose.msra.mxu0 0
    %552 = vmatpush.bf16.xpose.msra.mxu0 0
    %553 = vmatpush.bf16.xpose.msra.mxu0 0
    %554 = vmatpush.bf16.xpose.msra.mxu0 0
    %555 = vmatpush.bf16.xpose.msra.mxu0 0
    %556 = vmatpush.bf16.xpose.msra.mxu0 %v547
    %557 = vmatmul.bf16.gmra.mxu0 %v544
    %v558 = vpop.f32.mrf.mxu0
    %v559 = vadd.f32 0.0, %v558
    %v560 = vpop.f32.mrf.mxu0
    %561 = vdwg.mxu0
    %v562 = vsel %vm395, %v533, -inf
    %563 = vmax.xlane.f32.xlu0 %v562
    %v564 = vpop.xlane.xlu0 %563
    %v565 = vsel %vm395, %v559, -inf
    %566 = vmax.xlane.f32.xlu0 %v565
    %v567 = vpop.xlane.xlu0 %566
    %v568 = vsub.f32 %v533, %v564
    %v569 = vsub.f32 %v559, %v567
    %v570 = vmul.f32 %v568, 1.442695
    %v571 = vpow.pop %v570
    %v572 = vmul.f32 %v569, 1.442695
    %v573 = vpow.pop %v572
    %v574 = vsel %vm395, %v571, 0.0
    %575 = vadd.xlane.f32.xlu0 %v574
    %v576 = vpop.xlane.xlu0 %575
    %v577 = vsel %vm395, %v573, 0.0
    %578 = vadd.xlane.f32.xlu0 %v577
    %v579 = vpop.xlane.xlu0 %578
    %v580 = vrcp.pop %v576
    %v581 = vrcp.pop %v579
    %v582 = vmul.f32 %v576, %v580
    %v583 = vmul.f32 %v579, %v581
    %v584 = vsub.f32 2.0, %v582
    %v585 = vsub.f32 2.0, %v583
    %v586 = vmul.f32 %v580, %v584
    %v587 = vmul.f32 %v581, %v585
    %v588 = vmul.f32 %v571, %v586
    %v589 = vmul.f32 %v573, %v587
    %v590 = vpack.c.bf16 %v588, %v588
    %v591 = vpack.c.bf16 %v589, %v589
    %v593 = vunpack.c.l.b16 %v388
    %v594 = vpack.c.b16 %v593, %v593
    %595 = vrot.lane.b32.xlu0 %v594, 120
    %v596 = vpop.permute.xlu0 %595
    %v598 = vsel %vm395, %v590, 0
    %v601 = vsel %vm472, %v596, 0
    %603 = vmatpush.bf16.msra.mxu0 0
    %604 = vmatpush.bf16.msra.mxu0 0
    %605 = vmatpush.bf16.msra.mxu0 0
    %606 = vmatpush.bf16.msra.mxu0 0
    %607 = vmatpush.bf16.msra.mxu0 0
    %608 = vmatpush.bf16.msra.mxu0 0
    %609 = vmatpush.bf16.msra.mxu0 0
    %610 = vmatpush.bf16.msra.mxu0 %v601
    %611 = vmatmul.bf16.gmra.mxu0 %v598
    %v612 = vpop.f32.mrf.mxu0
    %v613 = vadd.f32 0.0, %v612
    %v614 = vpop.f32.mrf.mxu0
    %615 = vdwg.mxu0
    %v617 = vunpack.c.l.b16 %v389
    %v618 = vpack.c.b16 %v617, %v617
    %619 = vrot.lane.b32.xlu0 %v618, 120
    %v620 = vpop.permute.xlu0 %619
    %v622 = vsel %vm395, %v591, 0
    %v625 = vsel %vm472, %v620, 0
    %627 = vmatpush.bf16.msra.mxu0 0
    %628 = vmatpush.bf16.msra.mxu0 0
    %629 = vmatpush.bf16.msra.mxu0 0
    %630 = vmatpush.bf16.msra.mxu0 0
    %631 = vmatpush.bf16.msra.mxu0 0
    %632 = vmatpush.bf16.msra.mxu0 0
    %633 = vmatpush.bf16.msra.mxu0 0
    %634 = vmatpush.bf16.msra.mxu0 %v625
    %635 = vmatmul.bf16.gmra.mxu0 %v622
    %v636 = vpop.f32.mrf.mxu0
    %v637 = vadd.f32 0.0, %v636
    %v638 = vpop.f32.mrf.mxu0
    %639 = vdwg.mxu0
    %v640 = vpack.c.bf16 %v637, %v613
    %v641 = vld [vmem:[#allocation11 + $0x4] sm:$0xf]
    %v643 = vsel %vm395, %v640, 0
    %v646 = vsel %vm472, %v641, 0
    %648 = vmatpush.bf16.msra.mxu0 0
    %649 = vmatpush.bf16.msra.mxu0 0
    %650 = vmatpush.bf16.msra.mxu0 0
    %651 = vmatpush.bf16.msra.mxu0 0
    %652 = vmatpush.bf16.msra.mxu0 0
    %653 = vmatpush.bf16.msra.mxu0 0
    %654 = vmatpush.bf16.msra.mxu0 0
    %655 = vmatpush.bf16.msra.mxu0 %v646
    %656 = vmatmul.bf16.gmra.mxu0 %v643
    %v657 = vpop.f32.mrf.mxu0
    %v658 = vadd.f32 0.0, %v657
    %v659 = vpop.f32.mrf.mxu0
    %v660 = vadd.f32 0.0, %v659
    %661 = vdwg.mxu0
    %v663 = vsel %vm395, %v508, 0
    %v666 = vsel %vm472, %v509, 0
    %668 = vmatpush.bf16.msra.mxu0 0
    %669 = vmatpush.bf16.msra.mxu0 0
    %670 = vmatpush.bf16.msra.mxu0 0
    %671 = vmatpush.bf16.msra.mxu0 0
    %672 = vmatpush.bf16.msra.mxu0 0
    %673 = vmatpush.bf16.msra.mxu0 0
    %674 = vmatpush.bf16.msra.mxu0 0
    %675 = vmatpush.bf16.msra.mxu0 %v666
    %676 = vmatmul.bf16.gmra.mxu0 %v663
    %v677 = vpop.f32.mrf.mxu0
    %v678 = vadd.f32 %v658, %v677
    %v679 = vpop.f32.mrf.mxu0
    %v680 = vadd.f32 %v660, %v679
    %681 = vdwg.mxu0
    %682 = vrot.lane.b32.xlu0 %v512, 112
    %v683 = vpop.permute.xlu0 %682
    %684 = vrot.lane.b32.xlu0 %v392, 80
    %v685 = vpop.permute.xlu0 %684
    %v687 = vsel %vm395, %v683, 0
    %v690 = vsel %vm395, %v685, 0
    %692 = vmatpush.bf16.xpose.msra.mxu0 0
    %693 = vmatpush.bf16.xpose.msra.mxu0 0
    %694 = vmatpush.bf16.xpose.msra.mxu0 0
    %695 = vmatpush.bf16.xpose.msra.mxu0 0
    %696 = vmatpush.bf16.xpose.msra.mxu0 0
    %697 = vmatpush.bf16.xpose.msra.mxu0 0
    %698 = vmatpush.bf16.xpose.msra.mxu0 0
    %699 = vmatpush.bf16.xpose.msra.mxu0 %v690
    %700 = vmatmul.bf16.gmra.mxu0 %v687
    %v701 = vpop.f32.mrf.mxu0
    %v702 = vadd.f32 0.0, %v701
    %v703 = vpop.f32.mrf.mxu0
    %704 = vdwg.mxu0
    %705 = vrot.lane.b32.xlu0 %v538, 112
    %v706 = vpop.permute.xlu0 %705
    %707 = vrot.lane.b32.xlu0 %v417, 80
    %v708 = vpop.permute.xlu0 %707
    %v710 = vsel %vm395, %v706, 0
    %v713 = vsel %vm395, %v708, 0
    %715 = vmatpush.bf16.xpose.msra.mxu0 0
    %716 = vmatpush.bf16.xpose.msra.mxu0 0
    %717 = vmatpush.bf16.xpose.msra.mxu0 0
    %718 = vmatpush.bf16.xpose.msra.mxu0 0
    %719 = vmatpush.bf16.xpose.msra.mxu0 0
    %720 = vmatpush.bf16.xpose.msra.mxu0 0
    %721 = vmatpush.bf16.xpose.msra.mxu0 0
    %722 = vmatpush.bf16.xpose.msra.mxu0 %v713
    %723 = vmatmul.bf16.gmra.mxu0 %v710
    %v724 = vpop.f32.mrf.mxu0
    %v725 = vadd.f32 0.0, %v724
    %v726 = vpop.f32.mrf.mxu0
    %727 = vdwg.mxu0
    %v728 = vsel %vm395, %v702, -inf
    %729 = vmax.xlane.f32.xlu0 %v728
    %v730 = vpop.xlane.xlu0 %729
    %v731 = vsel %vm395, %v725, -inf
    %732 = vmax.xlane.f32.xlu0 %v731
    %v733 = vpop.xlane.xlu0 %732
    %v734 = vsub.f32 %v702, %v730
    %v735 = vsub.f32 %v725, %v733
    %v736 = vmul.f32 %v734, 1.442695
    %v737 = vpow.pop %v736
    %v738 = vmul.f32 %v735, 1.442695
    %v739 = vpow.pop %v738
    %v740 = vsel %vm395, %v737, 0.0
    %741 = vadd.xlane.f32.xlu0 %v740
    %v742 = vpop.xlane.xlu0 %741
    %v743 = vsel %vm395, %v739, 0.0
    %744 = vadd.xlane.f32.xlu0 %v743
    %v745 = vpop.xlane.xlu0 %744
    %v746 = vrcp.pop %v742
    %v747 = vrcp.pop %v745
    %v748 = vmul.f32 %v742, %v746
    %v749 = vmul.f32 %v745, %v747
    %v750 = vsub.f32 2.0, %v748
    %v751 = vsub.f32 2.0, %v749
    %v752 = vmul.f32 %v746, %v750
    %v753 = vmul.f32 %v747, %v751
    %v754 = vmul.f32 %v737, %v752
    %v755 = vmul.f32 %v739, %v753
    %v756 = vpack.c.bf16 %v754, %v754
    %v757 = vpack.c.bf16 %v755, %v755
    %758 = vrot.lane.b32.xlu0 %v594, 112
    %v759 = vpop.permute.xlu0 %758
    %v761 = vsel %vm395, %v756, 0
    %v764 = vsel %vm472, %v759, 0
    %766 = vmatpush.bf16.msra.mxu0 0
    %767 = vmatpush.bf16.msra.mxu0 0
    %768 = vmatpush.bf16.msra.mxu0 0
    %769 = vmatpush.bf16.msra.mxu0 0
    %770 = vmatpush.bf16.msra.mxu0 0
    %771 = vmatpush.bf16.msra.mxu0 0
    %772 = vmatpush.bf16.msra.mxu0 0
    %773 = vmatpush.bf16.msra.mxu0 %v764
    %774 = vmatmul.bf16.gmra.mxu0 %v761
    %v775 = vpop.f32.mrf.mxu0
    %v776 = vadd.f32 0.0, %v775
    %v777 = vpop.f32.mrf.mxu0
    %778 = vdwg.mxu0
    %779 = vrot.lane.b32.xlu0 %v618, 112
    %v780 = vpop.permute.xlu0 %779
    %v782 = vsel %vm395, %v757, 0
    %v785 = vsel %vm472, %v780, 0
    %787 = vmatpush.bf16.msra.mxu0 0
    %788 = vmatpush.bf16.msra.mxu0 0
    %789 = vmatpush.bf16.msra.mxu0 0
    %790 = vmatpush.bf16.msra.mxu0 0
    %791 = vmatpush.bf16.msra.mxu0 0
    %792 = vmatpush.bf16.msra.mxu0 0
    %793 = vmatpush.bf16.msra.mxu0 0
    %794 = vmatpush.bf16.msra.mxu0 %v785
    %795 = vmatmul.bf16.gmra.mxu0 %v782
    %v796 = vpop.f32.mrf.mxu0
    %v797 = vadd.f32 0.0, %v796
    %v798 = vpop.f32.mrf.mxu0
    %799 = vdwg.mxu0
    %v800 = vpack.c.bf16 %v797, %v776
    %v801 = vld [vmem:[#allocation11 + $0x8] sm:$0xf]
    %v803 = vsel %vm395, %v800, 0
    %v806 = vsel %vm472, %v801, 0
    %808 = vmatpush.bf16.msra.mxu0 0
    %809 = vmatpush.bf16.msra.mxu0 0
    %810 = vmatpush.bf16.msra.mxu0 0
    %811 = vmatpush.bf16.msra.mxu0 0
    %812 = vmatpush.bf16.msra.mxu0 0
    %813 = vmatpush.bf16.msra.mxu0 0
    %814 = vmatpush.bf16.msra.mxu0 0
    %815 = vmatpush.bf16.msra.mxu0 %v806
    %816 = vmatmul.bf16.gmra.mxu0 %v803
    %v817 = vpop.f32.mrf.mxu0
    %v818 = vadd.f32 0.0, %v817
    %v819 = vpop.f32.mrf.mxu0
    %v820 = vadd.f32 0.0, %v819
    %821 = vdwg.mxu0
    %v822 = vadd.f32 %v678, %v818
    %v823 = vadd.f32 %v680, %v820
    %824 = vrot.lane.b32.xlu0 %v512, 104
    %v825 = vpop.permute.xlu0 %824
    %826 = vrot.lane.b32.xlu0 %v392, 72
    %v827 = vpop.permute.xlu0 %826
    %v829 = vsel %vm395, %v825, 0
    %v832 = vsel %vm395, %v827, 0
    %834 = vmatpush.bf16.xpose.msra.mxu0 0
    %835 = vmatpush.bf16.xpose.msra.mxu0 0
    %836 = vmatpush.bf16.xpose.msra.mxu0 0
    %837 = vmatpush.bf16.xpose.msra.mxu0 0
    %838 = vmatpush.bf16.xpose.msra.mxu0 0
    %839 = vmatpush.bf16.xpose.msra.mxu0 0
    %840 = vmatpush.bf16.xpose.msra.mxu0 0
    %841 = vmatpush.bf16.xpose.msra.mxu0 %v832
    %842 = vmatmul.bf16.gmra.mxu0 %v829
    %v843 = vpop.f32.mrf.mxu0
    %v844 = vadd.f32 0.0, %v843
    %v845 = vpop.f32.mrf.mxu0
    %846 = vdwg.mxu0
    %847 = vrot.lane.b32.xlu0 %v538, 104
    %v848 = vpop.permute.xlu0 %847
    %849 = vrot.lane.b32.xlu0 %v417, 72
    %v850 = vpop.permute.xlu0 %849
    %v852 = vsel %vm395, %v848, 0
    %v855 = vsel %vm395, %v850, 0
    %857 = vmatpush.bf16.xpose.msra.mxu0 0
    %858 = vmatpush.bf16.xpose.msra.mxu0 0
    %859 = vmatpush.bf16.xpose.msra.mxu0 0
    %860 = vmatpush.bf16.xpose.msra.mxu0 0
    %861 = vmatpush.bf16.xpose.msra.mxu0 0
    %862 = vmatpush.bf16.xpose.msra.mxu0 0
    %863 = vmatpush.bf16.xpose.msra.mxu0 0
    %864 = vmatpush.bf16.xpose.msra.mxu0 %v855
    %865 = vmatmul.bf16.gmra.mxu0 %v852
    %v866 = vpop.f32.mrf.mxu0
    %v867 = vadd.f32 0.0, %v866
    %v868 = vpop.f32.mrf.mxu0
    %869 = vdwg.mxu0
    %v870 = vsel %vm395, %v844, -inf
    %871 = vmax.xlane.f32.xlu0 %v870
    %v872 = vpop.xlane.xlu0 %871
    %v873 = vsel %vm395, %v867, -inf
    %874 = vmax.xlane.f32.xlu0 %v873
    %v875 = vpop.xlane.xlu0 %874
    %v876 = vsub.f32 %v844, %v872
    %v877 = vsub.f32 %v867, %v875
    %v878 = vmul.f32 %v876, 1.442695
    %v879 = vpow.pop %v878
    %v880 = vmul.f32 %v877, 1.442695
    %v881 = vpow.pop %v880
    %v882 = vsel %vm395, %v879, 0.0
    %883 = vadd.xlane.f32.xlu0 %v882
    %v884 = vpop.xlane.xlu0 %883
    %v885 = vsel %vm395, %v881, 0.0
    %886 = vadd.xlane.f32.xlu0 %v885
    %v887 = vpop.xlane.xlu0 %886
    %v888 = vrcp.pop %v884
    %v889 = vrcp.pop %v887
    %v890 = vmul.f32 %v884, %v888
    %v891 = vmul.f32 %v887, %v889
    %v892 = vsub.f32 2.0, %v890
    %v893 = vsub.f32 2.0, %v891
    %v894 = vmul.f32 %v888, %v892
    %v895 = vmul.f32 %v889, %v893
    %v896 = vmul.f32 %v879, %v894
    %v897 = vmul.f32 %v881, %v895
    %v898 = vpack.c.bf16 %v896, %v896
    %v899 = vpack.c.bf16 %v897, %v897
    %900 = vrot.lane.b32.xlu0 %v594, 104
    %v901 = vpop.permute.xlu0 %900
    %v903 = vsel %vm395, %v898, 0
    %v906 = vsel %vm472, %v901, 0
    %908 = vmatpush.bf16.msra.mxu0 0
    %909 = vmatpush.bf16.msra.mxu0 0
    %910 = vmatpush.bf16.msra.mxu0 0
    %911 = vmatpush.bf16.msra.mxu0 0
    %912 = vmatpush.bf16.msra.mxu0 0
    %913 = vmatpush.bf16.msra.mxu0 0
    %914 = vmatpush.bf16.msra.mxu0 0
    %915 = vmatpush.bf16.msra.mxu0 %v906
    %916 = vmatmul.bf16.gmra.mxu0 %v903
    %v917 = vpop.f32.mrf.mxu0
    %v918 = vadd.f32 0.0, %v917
    %v919 = vpop.f32.mrf.mxu0
    %920 = vdwg.mxu0
    %921 = vrot.lane.b32.xlu0 %v618, 104
    %v922 = vpop.permute.xlu0 %921
    %v924 = vsel %vm395, %v899, 0
    %v927 = vsel %vm472, %v922, 0
    %929 = vmatpush.bf16.msra.mxu0 0
    %930 = vmatpush.bf16.msra.mxu0 0
    %931 = vmatpush.bf16.msra.mxu0 0
    %932 = vmatpush.bf16.msra.mxu0 0
    %933 = vmatpush.bf16.msra.mxu0 0
    %934 = vmatpush.bf16.msra.mxu0 0
    %935 = vmatpush.bf16.msra.mxu0 0
    %936 = vmatpush.bf16.msra.mxu0 %v927
    %937 = vmatmul.bf16.gmra.mxu0 %v924
    %v938 = vpop.f32.mrf.mxu0
    %v939 = vadd.f32 0.0, %v938
    %v940 = vpop.f32.mrf.mxu0
    %941 = vdwg.mxu0
    %v942 = vpack.c.bf16 %v939, %v918
    %v943 = vld [vmem:[#allocation11 + $0xc] sm:$0xf]
    %v945 = vsel %vm395, %v942, 0
    %v948 = vsel %vm472, %v943, 0
    %950 = vmatpush.bf16.msra.mxu0 0
    %951 = vmatpush.bf16.msra.mxu0 0
    %952 = vmatpush.bf16.msra.mxu0 0
    %953 = vmatpush.bf16.msra.mxu0 0
    %954 = vmatpush.bf16.msra.mxu0 0
    %955 = vmatpush.bf16.msra.mxu0 0
    %956 = vmatpush.bf16.msra.mxu0 0
    %957 = vmatpush.bf16.msra.mxu0 %v948
    %958 = vmatmul.bf16.gmra.mxu0 %v945
    %v959 = vpop.f32.mrf.mxu0
    %v960 = vadd.f32 0.0, %v959
    %v961 = vpop.f32.mrf.mxu0
    %v962 = vadd.f32 0.0, %v961
    %963 = vdwg.mxu0
    %v964 = vadd.f32 %v822, %v960
    %v965 = vadd.f32 %v823, %v962
    %v966 = vperm.slane %v381, 0
    %v967 = vadd.f32 %v964, %v966
    %v968 = vadd.f32 %v965, %v966
    %v969 = vadd.f32 %v295, %v967
    %v970 = vadd.f32 %v296, %v968
    %v971 = vld [vmem:[#allocation5 + $0x2] sm:$0x1]
    %v972 = vld [vmem:[#allocation5 + $0x3] sm:$0x1]
    %v973 = vsel %vm239, %v969, 0.0
    %974 = vadd.xlane.f32.xlu0 %v973
    %v975 = vpop.xlane.xlu0 %974
    %v976 = vsel %vm239, %v970, 0.0
    %977 = vadd.xlane.f32.xlu0 %v976
    %v978 = vpop.xlane.xlu0 %977
    %v979 = vmul.f32 %v975, %v252
    %v980 = vmul.f32 %v978, %v252
    %v981 = vsub.f32 %v969, %v979
    %v982 = vsub.f32 %v970, %v980
    %v983 = vmul.f32 %v981, %v981
    %v984 = vmul.f32 %v982, %v982
    %v985 = vsel %vm239, %v983, 0.0
    %986 = vadd.xlane.f32.xlu0 %v985
    %v987 = vpop.xlane.xlu0 %986
    %v988 = vsel %vm239, %v984, 0.0
    %989 = vadd.xlane.f32.xlu0 %v988
    %v990 = vpop.xlane.xlu0 %989
    %v991 = vmul.f32 %v987, %v252
    %v992 = vmul.f32 %v990, %v252
    %v993 = vadd.f32 %v991, 1e-05
    %v994 = vadd.f32 %v992, 1e-05
    %v995 = vrsqrt.pop %v993
    %v996 = vmul.f32 %v995, %v993
    %v997 = vmul.f32 %v996, %v995
    %v998 = vmul.f32 0.5, %v997
    %v999 = vsub.f32 1.5, %v998
    %v1000 = vmul.f32 %v995, %v999
    %vm1001 = vweird.f32 %v993
    %vm1002 = vweird.f32 %v995
    %vm1003 = vmor %vm1001, %vm1002
    %v1004 = vsel %vm1003, %v995, %v1000
    %v1005 = vrsqrt.pop %v994
    %v1006 = vmul.f32 %v1005, %v994
    %v1007 = vmul.f32 %v1006, %v1005
    %v1008 = vmul.f32 0.5, %v1007
    %v1009 = vsub.f32 1.5, %v1008
    %v1010 = vmul.f32 %v1005, %v1009
    %vm1011 = vweird.f32 %v994
    %vm1012 = vweird.f32 %v1005
    %vm1013 = vmor %vm1011, %vm1012
    %v1014 = vsel %vm1013, %v1005, %v1010
    %v1015 = vmul.f32 %v981, %v1004
    %v1016 = vmul.f32 %v982, %v1014
    %v1017 = vperm.slane %v971, 0
    %v1018 = vmul.f32 %v1015, %v1017
    %v1019 = vmul.f32 %v1016, %v1017
    %v1020 = vperm.slane %v972, 0
    %v1021 = vadd.f32 %v1018, %v1020
    %v1022 = vadd.f32 %v1019, %v1020
    %v1023 = vadd.f32 %v1021, %v231
    %v1024 = vadd.f32 %v1022, %v232
    %v1025 = vpack.c.bf16 %v1024, %v1023
    %v1026 = vld [vmem:[#allocation13] sm:$0xf]
    %v1027 = vld [vmem:[#allocation13 + $0x4] sm:$0xf]
    %v1028 = vld [vmem:[#allocation13 + $0x8] sm:$0xf]
    %v1029 = vld [vmem:[#allocation13 + $0xc] sm:$0xf]
    %v1030 = vld [vmem:[#allocation7 + $0x4] sm:$0x1]
    %v1031 = vperm.slane %v1030, 0
    %v1036 = vunpack.c.l.b16 %v1026
    %v1037 = vunpack.c.l.b16 %v1027
    %v1038 = vunpack.c.l.b16 %v1028
    %v1039 = vunpack.c.l.b16 %v1029
    %v1040 = vpack.c.b16 %v1037, %v1036
    %v1041 = vpack.c.b16 %v1039, %v1038
    %v1045 = vsel %vm239, %v1025, 0
    %1047 = vmatpush.bf16.msra.mxu0 0
    %1048 = vmatpush.bf16.msra.mxu0 0
    %1049 = vmatpush.bf16.msra.mxu0 0
    %1050 = vmatpush.bf16.msra.mxu0 0
    %1051 = vmatpush.bf16.msra.mxu0 0
    %1052 = vmatpush.bf16.msra.mxu0 0
    %1053 = vmatpush.bf16.msra.mxu0 %v1041
    %1054 = vmatpush.bf16.msra.mxu0 %v1040
    %1055 = vmatmul.bf16.gmra.mxu0 %v1045
    %v1056 = vpop.f32.mrf.mxu0
    %v1057 = vadd.f32 %v1031, %v1056
    %v1058 = vpop.f32.mrf.mxu0
    %v1059 = vadd.f32 %v1031, %v1058
    %1060 = vdwg.mxu0
    %v1061 = vadd.f32 %v227, %v233
    %v1062 = vadd.f32 %v228, %v234
    %v1063 = vadd.f32 %v229, %v235
    %v1064 = vadd.f32 %v230, %v236
    %v1065 = vpack.c.bf16 %v1062, %v1061
    %v1066 = vpack.c.bf16 %v1064, %v1063
    %v1067 = vld [vmem:[#allocation14] sm:$0xf]
    %v1068 = vld [vmem:[#allocation14 + $0x4] sm:$0xf]
    %v1069 = vld [vmem:[#allocation14 + $0x8] sm:$0xf]
    %v1070 = vld [vmem:[#allocation14 + $0xc] sm:$0xf]
    %v1071 = vld [vmem:[#allocation7 + $0x5] sm:$0x1]
    %v1072 = vperm.slane %v1071, 0
    %v1077 = vunpack.c.l.b16 %v1067
    %v1078 = vunpack.c.l.b16 %v1068
    %v1079 = vunpack.c.l.b16 %v1069
    %v1080 = vunpack.c.l.b16 %v1070
    %v1081 = vpack.c.b16 %v1078, %v1077
    %v1082 = vpack.c.b16 %v1080, %v1079
    %v1086 = vsel %vm239, %v1065, 0
    %v1089 = vsel %vm239, %v1066, 0
    %1091 = vmatpush.bf16.msra.mxu0 0
    %1092 = vmatpush.bf16.msra.mxu0 0
    %1093 = vmatpush.bf16.msra.mxu0 0
    %1094 = vmatpush.bf16.msra.mxu0 0
    %1095 = vmatpush.bf16.msra.mxu0 0
    %1096 = vmatpush.bf16.msra.mxu0 0
    %1097 = vmatpush.bf16.msra.mxu0 %v1082
    %1098 = vmatpush.bf16.msra.mxu0 %v1081
    %1099 = vmatmul.bf16.gmra.mxu0 %v1086
    %v1100 = vpop.f32.mrf.mxu0
    %v1101 = vadd.f32 %v1072, %v1100
    %v1102 = vpop.f32.mrf.mxu0
    %v1103 = vadd.f32 %v1072, %v1102
    %1104 = vmatmul.bf16.gmra.mxu0 %v1089
    %v1105 = vpop.f32.mrf.mxu0
    %v1106 = vadd.f32 %v1072, %v1105
    %v1107 = vpop.f32.mrf.mxu0
    %v1108 = vadd.f32 %v1072, %v1107
    %1109 = vdwg.mxu0
    %v1110 = vpack.c.bf16 %v228, %v227
    %v1111 = vpack.c.bf16 %v230, %v229
    %v1112 = vld [vmem:[#allocation16] sm:$0xf]
    %v1113 = vld [vmem:[#allocation16 + $0x4] sm:$0xf]
    %v1114 = vld [vmem:[#allocation16 + $0x8] sm:$0xf]
    %v1115 = vld [vmem:[#allocation16 + $0xc] sm:$0xf]
    %v1116 = vld [vmem:[#allocation7 + $0x6] sm:$0x1]
    %v1117 = vperm.slane %v1116, 0
    %v1122 = vunpack.c.l.b16 %v1112
    %v1123 = vunpack.c.l.b16 %v1113
    %v1124 = vunpack.c.l.b16 %v1114
    %v1125 = vunpack.c.l.b16 %v1115
    %v1126 = vpack.c.b16 %v1123, %v1122
    %v1127 = vpack.c.b16 %v1125, %v1124
    %v1131 = vsel %vm239, %v1110, 0
    %v1134 = vsel %vm239, %v1111, 0
    %1136 = vmatpush.bf16.msra.mxu0 0
    %1137 = vmatpush.bf16.msra.mxu0 0
    %1138 = vmatpush.bf16.msra.mxu0 0
    %1139 = vmatpush.bf16.msra.mxu0 0
    %1140 = vmatpush.bf16.msra.mxu0 0
    %1141 = vmatpush.bf16.msra.mxu0 0
    %1142 = vmatpush.bf16.msra.mxu0 %v1127
    %1143 = vmatpush.bf16.msra.mxu0 %v1126
    %1144 = vmatmul.bf16.gmra.mxu0 %v1131
    %v1145 = vpop.f32.mrf.mxu0
    %v1146 = vadd.f32 %v1117, %v1145
    %v1147 = vpop.f32.mrf.mxu0
    %v1148 = vadd.f32 %v1117, %v1147
    %1149 = vmatmul.bf16.gmra.mxu0 %v1134
    %v1150 = vpop.f32.mrf.mxu0
    %v1151 = vadd.f32 %v1117, %v1150
    %v1152 = vpop.f32.mrf.mxu0
    %v1153 = vadd.f32 %v1117, %v1152
    %1154 = vdwg.mxu0
    %v1155 = vld [vmem:[#allocation7 + $0x7] sm:$0x1]
    %v1156 = vmul.f32 %v1057, 0.35355338
    %v1157 = vmul.f32 %v1059, 0.35355338
    %v1158 = vpack.c.bf16 %v1156, %v1156
    %v1159 = vpack.c.bf16 %v1157, %v1157
    %v1160 = vpack.c.bf16 %v1101, %v1101
    %v1161 = vpack.c.bf16 %v1103, %v1103
    %v1162 = vpack.c.bf16 %v1106, %v1106
    %v1163 = vpack.c.bf16 %v1108, %v1108
    %v1164 = vpack.c.bf16 %v1146, %v1146
    %v1165 = vpack.c.bf16 %v1148, %v1148
    %v1166 = vpack.c.bf16 %v1151, %v1151
    %v1167 = vpack.c.bf16 %v1153, %v1153
    %v1170 = vunpack.c.l.b16 %v1160
    %v1171 = vunpack.c.l.b16 %v1161
    %v1172 = vpack.c.b16 %v1171, %v1170
    %v1174 = vsel %vm395, %v1158, 0
    %v1177 = vsel %vm395, %v1172, 0
    %1179 = vmatpush.bf16.xpose.msra.mxu0 0
    %1180 = vmatpush.bf16.xpose.msra.mxu0 0
    %1181 = vmatpush.bf16.xpose.msra.mxu0 0
    %1182 = vmatpush.bf16.xpose.msra.mxu0 0
    %1183 = vmatpush.bf16.xpose.msra.mxu0 0
    %1184 = vmatpush.bf16.xpose.msra.mxu0 0
    %1185 = vmatpush.bf16.xpose.msra.mxu0 0
    %1186 = vmatpush.bf16.xpose.msra.mxu0 %v1177
    %1187 = vmatmul.bf16.gmra.mxu0 %v1174
    %v1188 = vpop.f32.mrf.mxu0
    %v1189 = vadd.f32 0.0, %v1188
    %v1190 = vpop.f32.mrf.mxu0
    %1191 = vdwg.mxu0
    %v1194 = vunpack.c.l.b16 %v1162
    %v1195 = vunpack.c.l.b16 %v1163
    %v1196 = vpack.c.b16 %v1195, %v1194
    %v1198 = vsel %vm395, %v1159, 0
    %v1201 = vsel %vm395, %v1196, 0
    %1203 = vmatpush.bf16.xpose.msra.mxu0 0
    %1204 = vmatpush.bf16.xpose.msra.mxu0 0
    %1205 = vmatpush.bf16.xpose.msra.mxu0 0
    %1206 = vmatpush.bf16.xpose.msra.mxu0 0
    %1207 = vmatpush.bf16.xpose.msra.mxu0 0
    %1208 = vmatpush.bf16.xpose.msra.mxu0 0
    %1209 = vmatpush.bf16.xpose.msra.mxu0 0
    %1210 = vmatpush.bf16.xpose.msra.mxu0 %v1201
    %1211 = vmatmul.bf16.gmra.mxu0 %v1198
    %v1212 = vpop.f32.mrf.mxu0
    %v1213 = vadd.f32 0.0, %v1212
    %v1214 = vpop.f32.mrf.mxu0
    %1215 = vdwg.mxu0
    %vm1216 = vcmask 130048
    %v1217 = vsel %vm1216, %v1189, -inf
    %1218 = vmax.xlane.f32.xlu0 %v1217
    %v1219 = vpop.xlane.xlu0 %1218
    %v1220 = vsel %vm1216, %v1213, -inf
    %1221 = vmax.xlane.f32.xlu0 %v1220
    %v1222 = vpop.xlane.xlu0 %1221
    %v1223 = vsub.f32 %v1189, %v1219
    %v1224 = vsub.f32 %v1213, %v1222
    %v1225 = vmul.f32 %v1223, 1.442695
    %v1226 = vpow.pop %v1225
    %v1227 = vmul.f32 %v1224, 1.442695
    %v1228 = vpow.pop %v1227
    %v1229 = vsel %vm1216, %v1226, 0.0
    %1230 = vadd.xlane.f32.xlu0 %v1229
    %v1231 = vpop.xlane.xlu0 %1230
    %v1232 = vsel %vm1216, %v1228, 0.0
    %1233 = vadd.xlane.f32.xlu0 %v1232
    %v1234 = vpop.xlane.xlu0 %1233
    %v1235 = vrcp.pop %v1231
    %v1236 = vrcp.pop %v1234
    %v1237 = vmul.f32 %v1231, %v1235
    %v1238 = vmul.f32 %v1234, %v1236
    %v1239 = vsub.f32 2.0, %v1237
    %v1240 = vsub.f32 2.0, %v1238
    %v1241 = vmul.f32 %v1235, %v1239
    %v1242 = vmul.f32 %v1236, %v1240
    %v1243 = vmul.f32 %v1226, %v1241
    %v1244 = vmul.f32 %v1228, %v1242
    %v1245 = vpack.c.bf16 %v1243, %v1243
    %v1246 = vpack.c.bf16 %v1244, %v1244
    %v1249 = vunpack.c.l.b16 %v1164
    %v1250 = vunpack.c.l.b16 %v1165
    %v1251 = vpack.c.b16 %v1250, %v1249
    %v1254 = vsel %vm1216, %v1245, 0
    %1256 = vmatpush.bf16.msra.mxu0 0
    %1257 = vmatpush.bf16.msra.mxu0 0
    %1258 = vmatpush.bf16.msra.mxu0 0
    %1259 = vmatpush.bf16.msra.mxu0 0
    %1260 = vmatpush.bf16.msra.mxu0 0
    %1261 = vmatpush.bf16.msra.mxu0 0
    %1262 = vmatpush.bf16.msra.mxu0 0
    %1263 = vmatpush.bf16.msra.mxu0 %v1251
    %1264 = vmatmul.bf16.gmra.mxu0 %v1254
    %v1265 = vpop.f32.mrf.mxu0
    %v1266 = vadd.f32 0.0, %v1265
    %v1267 = vpop.f32.mrf.mxu0
    %1268 = vdwg.mxu0
    %v1271 = vunpack.c.l.b16 %v1166
    %v1272 = vunpack.c.l.b16 %v1167
    %v1273 = vpack.c.b16 %v1272, %v1271
    %v1276 = vsel %vm1216, %v1246, 0
    %1278 = vmatpush.bf16.msra.mxu0 0
    %1279 = vmatpush.bf16.msra.mxu0 0
    %1280 = vmatpush.bf16.msra.mxu0 0
    %1281 = vmatpush.bf16.msra.mxu0 0
    %1282 = vmatpush.bf16.msra.mxu0 0
    %1283 = vmatpush.bf16.msra.mxu0 0
    %1284 = vmatpush.bf16.msra.mxu0 0
    %1285 = vmatpush.bf16.msra.mxu0 %v1273
    %1286 = vmatmul.bf16.gmra.mxu0 %v1276
    %v1287 = vpop.f32.mrf.mxu0
    %v1288 = vadd.f32 0.0, %v1287
    %v1289 = vpop.f32.mrf.mxu0
    %1290 = vdwg.mxu0
    %v1291 = vpack.c.bf16 %v1288, %v1266
    %v1292 = vld [vmem:[#allocation17] sm:$0xf]
    %v1294 = vunpack.c.l.b16 %v1158
    %v1295 = vpack.c.b16 %v1294, %v1294
    %1296 = vrot.lane.b32.xlu0 %v1295, 120
    %v1297 = vpop.permute.xlu0 %1296
    %1298 = vrot.lane.b32.xlu0 %v1172, 120
    %v1299 = vpop.permute.xlu0 %1298
    %v1301 = vsel %vm395, %v1297, 0
    %v1304 = vsel %vm395, %v1299, 0
    %1306 = vmatpush.bf16.xpose.msra.mxu0 0
    %1307 = vmatpush.bf16.xpose.msra.mxu0 0
    %1308 = vmatpush.bf16.xpose.msra.mxu0 0
    %1309 = vmatpush.bf16.xpose.msra.mxu0 0
    %1310 = vmatpush.bf16.xpose.msra.mxu0 0
    %1311 = vmatpush.bf16.xpose.msra.mxu0 0
    %1312 = vmatpush.bf16.xpose.msra.mxu0 0
    %1313 = vmatpush.bf16.xpose.msra.mxu0 %v1304
    %1314 = vmatmul.bf16.gmra.mxu0 %v1301
    %v1315 = vpop.f32.mrf.mxu0
    %v1316 = vadd.f32 0.0, %v1315
    %v1317 = vpop.f32.mrf.mxu0
    %1318 = vdwg.mxu0
    %v1320 = vunpack.c.l.b16 %v1159
    %v1321 = vpack.c.b16 %v1320, %v1320
    %1322 = vrot.lane.b32.xlu0 %v1321, 120
    %v1323 = vpop.permute.xlu0 %1322
    %1324 = vrot.lane.b32.xlu0 %v1196, 120
    %v1325 = vpop.permute.xlu0 %1324
    %v1327 = vsel %vm395, %v1323, 0
    %v1330 = vsel %vm395, %v1325, 0
    %1332 = vmatpush.bf16.xpose.msra.mxu0 0
    %1333 = vmatpush.bf16.xpose.msra.mxu0 0
    %1334 = vmatpush.bf16.xpose.msra.mxu0 0
    %1335 = vmatpush.bf16.xpose.msra.mxu0 0
    %1336 = vmatpush.bf16.xpose.msra.mxu0 0
    %1337 = vmatpush.bf16.xpose.msra.mxu0 0
    %1338 = vmatpush.bf16.xpose.msra.mxu0 0
    %1339 = vmatpush.bf16.xpose.msra.mxu0 %v1330
    %1340 = vmatmul.bf16.gmra.mxu0 %v1327
    %v1341 = vpop.f32.mrf.mxu0
    %v1342 = vadd.f32 0.0, %v1341
    %v1343 = vpop.f32.mrf.mxu0
    %1344 = vdwg.mxu0
    %v1345 = vsel %vm1216, %v1316, -inf
    %1346 = vmax.xlane.f32.xlu0 %v1345
    %v1347 = vpop.xlane.xlu0 %1346
    %v1348 = vsel %vm1216, %v1342, -inf
    %1349 = vmax.xlane.f32.xlu0 %v1348
    %v1350 = vpop.xlane.xlu0 %1349
    %v1351 = vsub.f32 %v1316, %v1347
    %v1352 = vsub.f32 %v1342, %v1350
    %v1353 = vmul.f32 %v1351, 1.442695
    %v1354 = vpow.pop %v1353
    %v1355 = vmul.f32 %v1352, 1.442695
    %v1356 = vpow.pop %v1355
    %v1357 = vsel %vm1216, %v1354, 0.0
    %1358 = vadd.xlane.f32.xlu0 %v1357
    %v1359 = vpop.xlane.xlu0 %1358
    %v1360 = vsel %vm1216, %v1356, 0.0
    %1361 = vadd.xlane.f32.xlu0 %v1360
    %v1362 = vpop.xlane.xlu0 %1361
    %v1363 = vrcp.pop %v1359
    %v1364 = vrcp.pop %v1362
    %v1365 = vmul.f32 %v1359, %v1363
    %v1366 = vmul.f32 %v1362, %v1364
    %v1367 = vsub.f32 2.0, %v1365
    %v1368 = vsub.f32 2.0, %v1366
    %v1369 = vmul.f32 %v1363, %v1367
    %v1370 = vmul.f32 %v1364, %v1368
    %v1371 = vmul.f32 %v1354, %v1369
    %v1372 = vmul.f32 %v1356, %v1370
    %v1373 = vpack.c.bf16 %v1371, %v1371
    %v1374 = vpack.c.bf16 %v1372, %v1372
    %1375 = vrot.lane.b32.xlu0 %v1251, 120
    %v1376 = vpop.permute.xlu0 %1375
    %v1379 = vsel %vm1216, %v1373, 0
    %1381 = vmatpush.bf16.msra.mxu0 0
    %1382 = vmatpush.bf16.msra.mxu0 0
    %1383 = vmatpush.bf16.msra.mxu0 0
    %1384 = vmatpush.bf16.msra.mxu0 0
    %1385 = vmatpush.bf16.msra.mxu0 0
    %1386 = vmatpush.bf16.msra.mxu0 0
    %1387 = vmatpush.bf16.msra.mxu0 0
    %1388 = vmatpush.bf16.msra.mxu0 %v1376
    %1389 = vmatmul.bf16.gmra.mxu0 %v1379
    %v1390 = vpop.f32.mrf.mxu0
    %v1391 = vadd.f32 0.0, %v1390
    %v1392 = vpop.f32.mrf.mxu0
    %1393 = vdwg.mxu0
    %1394 = vrot.lane.b32.xlu0 %v1273, 120
    %v1395 = vpop.permute.xlu0 %1394
    %v1398 = vsel %vm1216, %v1374, 0
    %1400 = vmatpush.bf16.msra.mxu0 0
    %1401 = vmatpush.bf16.msra.mxu0 0
    %1402 = vmatpush.bf16.msra.mxu0 0
    %1403 = vmatpush.bf16.msra.mxu0 0
    %1404 = vmatpush.bf16.msra.mxu0 0
    %1405 = vmatpush.bf16.msra.mxu0 0
    %1406 = vmatpush.bf16.msra.mxu0 0
    %1407 = vmatpush.bf16.msra.mxu0 %v1395
    %1408 = vmatmul.bf16.gmra.mxu0 %v1398
    %v1409 = vpop.f32.mrf.mxu0
    %v1410 = vadd.f32 0.0, %v1409
    %v1411 = vpop.f32.mrf.mxu0
    %1412 = vdwg.mxu0
    %v1413 = vpack.c.bf16 %v1410, %v1391
    %v1414 = vld [vmem:[#allocation17 + $0x4] sm:$0xf]
    %v1416 = vsel %vm395, %v1413, 0
    %v1419 = vsel %vm472, %v1414, 0
    %1421 = vmatpush.bf16.msra.mxu0 0
    %1422 = vmatpush.bf16.msra.mxu0 0
    %1423 = vmatpush.bf16.msra.mxu0 0
    %1424 = vmatpush.bf16.msra.mxu0 0
    %1425 = vmatpush.bf16.msra.mxu0 0
    %1426 = vmatpush.bf16.msra.mxu0 0
    %1427 = vmatpush.bf16.msra.mxu0 0
    %1428 = vmatpush.bf16.msra.mxu0 %v1419
    %1429 = vmatmul.bf16.gmra.mxu0 %v1416
    %v1430 = vpop.f32.mrf.mxu0
    %v1431 = vadd.f32 0.0, %v1430
    %v1432 = vpop.f32.mrf.mxu0
    %v1433 = vadd.f32 0.0, %v1432
    %1434 = vdwg.mxu0
    %v1436 = vsel %vm395, %v1291, 0
    %v1439 = vsel %vm472, %v1292, 0
    %1441 = vmatpush.bf16.msra.mxu0 0
    %1442 = vmatpush.bf16.msra.mxu0 0
    %1443 = vmatpush.bf16.msra.mxu0 0
    %1444 = vmatpush.bf16.msra.mxu0 0
    %1445 = vmatpush.bf16.msra.mxu0 0
    %1446 = vmatpush.bf16.msra.mxu0 0
    %1447 = vmatpush.bf16.msra.mxu0 0
    %1448 = vmatpush.bf16.msra.mxu0 %v1439
    %1449 = vmatmul.bf16.gmra.mxu0 %v1436
    %v1450 = vpop.f32.mrf.mxu0
    %v1451 = vadd.f32 %v1431, %v1450
    %v1452 = vpop.f32.mrf.mxu0
    %v1453 = vadd.f32 %v1433, %v1452
    %1454 = vdwg.mxu0
    %1455 = vrot.lane.b32.xlu0 %v1295, 112
    %v1456 = vpop.permute.xlu0 %1455
    %1457 = vrot.lane.b32.xlu0 %v1172, 112
    %v1458 = vpop.permute.xlu0 %1457
    %v1460 = vsel %vm395, %v1456, 0
    %v1463 = vsel %vm395, %v1458, 0
    %1465 = vmatpush.bf16.xpose.msra.mxu0 0
    %1466 = vmatpush.bf16.xpose.msra.mxu0 0
    %1467 = vmatpush.bf16.xpose.msra.mxu0 0
    %1468 = vmatpush.bf16.xpose.msra.mxu0 0
    %1469 = vmatpush.bf16.xpose.msra.mxu0 0
    %1470 = vmatpush.bf16.xpose.msra.mxu0 0
    %1471 = vmatpush.bf16.xpose.msra.mxu0 0
    %1472 = vmatpush.bf16.xpose.msra.mxu0 %v1463
    %1473 = vmatmul.bf16.gmra.mxu0 %v1460
    %v1474 = vpop.f32.mrf.mxu0
    %v1475 = vadd.f32 0.0, %v1474
    %v1476 = vpop.f32.mrf.mxu0
    %1477 = vdwg.mxu0
    %1478 = vrot.lane.b32.xlu0 %v1321, 112
    %v1479 = vpop.permute.xlu0 %1478
    %1480 = vrot.lane.b32.xlu0 %v1196, 112
    %v1481 = vpop.permute.xlu0 %1480
    %v1483 = vsel %vm395, %v1479, 0
    %v1486 = vsel %vm395, %v1481, 0
    %1488 = vmatpush.bf16.xpose.msra.mxu0 0
    %1489 = vmatpush.bf16.xpose.msra.mxu0 0
    %1490 = vmatpush.bf16.xpose.msra.mxu0 0
    %1491 = vmatpush.bf16.xpose.msra.mxu0 0
    %1492 = vmatpush.bf16.xpose.msra.mxu0 0
    %1493 = vmatpush.bf16.xpose.msra.mxu0 0
    %1494 = vmatpush.bf16.xpose.msra.mxu0 0
    %1495 = vmatpush.bf16.xpose.msra.mxu0 %v1486
    %1496 = vmatmul.bf16.gmra.mxu0 %v1483
    %v1497 = vpop.f32.mrf.mxu0
    %v1498 = vadd.f32 0.0, %v1497
    %v1499 = vpop.f32.mrf.mxu0
    %1500 = vdwg.mxu0
    %v1501 = vsel %vm1216, %v1475, -inf
    %1502 = vmax.xlane.f32.xlu0 %v1501
    %v1503 = vpop.xlane.xlu0 %1502
    %v1504 = vsel %vm1216, %v1498, -inf
    %1505 = vmax.xlane.f32.xlu0 %v1504
    %v1506 = vpop.xlane.xlu0 %1505
    %v1507 = vsub.f32 %v1475, %v1503
    %v1508 = vsub.f32 %v1498, %v1506
    %v1509 = vmul.f32 %v1507, 1.442695
    %v1510 = vpow.pop %v1509
    %v1511 = vmul.f32 %v1508, 1.442695
    %v1512 = vpow.pop %v1511
    %v1513 = vsel %vm1216, %v1510, 0.0
    %1514 = vadd.xlane.f32.xlu0 %v1513
    %v1515 = vpop.xlane.xlu0 %1514
    %v1516 = vsel %vm1216, %v1512, 0.0
    %1517 = vadd.xlane.f32.xlu0 %v1516
    %v1518 = vpop.xlane.xlu0 %1517
    %v1519 = vrcp.pop %v1515
    %v1520 = vrcp.pop %v1518
    %v1521 = vmul.f32 %v1515, %v1519
    %v1522 = vmul.f32 %v1518, %v1520
    %v1523 = vsub.f32 2.0, %v1521
    %v1524 = vsub.f32 2.0, %v1522
    %v1525 = vmul.f32 %v1519, %v1523
    %v1526 = vmul.f32 %v1520, %v1524
    %v1527 = vmul.f32 %v1510, %v1525
    %v1528 = vmul.f32 %v1512, %v1526
    %v1529 = vpack.c.bf16 %v1527, %v1527
    %v1530 = vpack.c.bf16 %v1528, %v1528
    %1531 = vrot.lane.b32.xlu0 %v1251, 112
    %v1532 = vpop.permute.xlu0 %1531
    %v1535 = vsel %vm1216, %v1529, 0
    %1537 = vmatpush.bf16.msra.mxu0 0
    %1538 = vmatpush.bf16.msra.mxu0 0
    %1539 = vmatpush.bf16.msra.mxu0 0
    %1540 = vmatpush.bf16.msra.mxu0 0
    %1541 = vmatpush.bf16.msra.mxu0 0
    %1542 = vmatpush.bf16.msra.mxu0 0
    %1543 = vmatpush.bf16.msra.mxu0 0
    %1544 = vmatpush.bf16.msra.mxu0 %v1532
    %1545 = vmatmul.bf16.gmra.mxu0 %v1535
    %v1546 = vpop.f32.mrf.mxu0
    %v1547 = vadd.f32 0.0, %v1546
    %v1548 = vpop.f32.mrf.mxu0
    %1549 = vdwg.mxu0
    %1550 = vrot.lane.b32.xlu0 %v1273, 112
    %v1551 = vpop.permute.xlu0 %1550
    %v1554 = vsel %vm1216, %v1530, 0
    %1556 = vmatpush.bf16.msra.mxu0 0
    %1557 = vmatpush.bf16.msra.mxu0 0
    %1558 = vmatpush.bf16.msra.mxu0 0
    %1559 = vmatpush.bf16.msra.mxu0 0
    %1560 = vmatpush.bf16.msra.mxu0 0
    %1561 = vmatpush.bf16.msra.mxu0 0
    %1562 = vmatpush.bf16.msra.mxu0 0
    %1563 = vmatpush.bf16.msra.mxu0 %v1551
    %1564 = vmatmul.bf16.gmra.mxu0 %v1554
    %v1565 = vpop.f32.mrf.mxu0
    %v1566 = vadd.f32 0.0, %v1565
    %v1567 = vpop.f32.mrf.mxu0
    %1568 = vdwg.mxu0
    %v1569 = vpack.c.bf16 %v1566, %v1547
    %v1570 = vld [vmem:[#allocation17 + $0x8] sm:$0xf]
    %v1572 = vsel %vm395, %v1569, 0
    %v1575 = vsel %vm472, %v1570, 0
    %1577 = vmatpush.bf16.msra.mxu0 0
    %1578 = vmatpush.bf16.msra.mxu0 0
    %1579 = vmatpush.bf16.msra.mxu0 0
    %1580 = vmatpush.bf16.msra.mxu0 0
    %1581 = vmatpush.bf16.msra.mxu0 0
    %1582 = vmatpush.bf16.msra.mxu0 0
    %1583 = vmatpush.bf16.msra.mxu0 0
    %1584 = vmatpush.bf16.msra.mxu0 %v1575
    %1585 = vmatmul.bf16.gmra.mxu0 %v1572
    %v1586 = vpop.f32.mrf.mxu0
    %v1587 = vadd.f32 0.0, %v1586
    %v1588 = vpop.f32.mrf.mxu0
    %v1589 = vadd.f32 0.0, %v1588
    %1590 = vdwg.mxu0
    %v1591 = vadd.f32 %v1451, %v1587
    %v1592 = vadd.f32 %v1453, %v1589
    %1593 = vrot.lane.b32.xlu0 %v1295, 104
    %v1594 = vpop.permute.xlu0 %1593
    %1595 = vrot.lane.b32.xlu0 %v1172, 104
    %v1596 = vpop.permute.xlu0 %1595
    %v1598 = vsel %vm395, %v1594, 0
    %v1601 = vsel %vm395, %v1596, 0
    %1603 = vmatpush.bf16.xpose.msra.mxu0 0
    %1604 = vmatpush.bf16.xpose.msra.mxu0 0
    %1605 = vmatpush.bf16.xpose.msra.mxu0 0
    %1606 = vmatpush.bf16.xpose.msra.mxu0 0
    %1607 = vmatpush.bf16.xpose.msra.mxu0 0
    %1608 = vmatpush.bf16.xpose.msra.mxu0 0
    %1609 = vmatpush.bf16.xpose.msra.mxu0 0
    %1610 = vmatpush.bf16.xpose.msra.mxu0 %v1601
    %1611 = vmatmul.bf16.gmra.mxu0 %v1598
    %v1612 = vpop.f32.mrf.mxu0
    %v1613 = vadd.f32 0.0, %v1612
    %v1614 = vpop.f32.mrf.mxu0
    %1615 = vdwg.mxu0
    %1616 = vrot.lane.b32.xlu0 %v1321, 104
    %v1617 = vpop.permute.xlu0 %1616
    %1618 = vrot.lane.b32.xlu0 %v1196, 104
    %v1619 = vpop.permute.xlu0 %1618
    %v1621 = vsel %vm395, %v1617, 0
    %v1624 = vsel %vm395, %v1619, 0
    %1626 = vmatpush.bf16.xpose.msra.mxu0 0
    %1627 = vmatpush.bf16.xpose.msra.mxu0 0
    %1628 = vmatpush.bf16.xpose.msra.mxu0 0
    %1629 = vmatpush.bf16.xpose.msra.mxu0 0
    %1630 = vmatpush.bf16.xpose.msra.mxu0 0
    %1631 = vmatpush.bf16.xpose.msra.mxu0 0
    %1632 = vmatpush.bf16.xpose.msra.mxu0 0
    %1633 = vmatpush.bf16.xpose.msra.mxu0 %v1624
    %1634 = vmatmul.bf16.gmra.mxu0 %v1621
    %v1635 = vpop.f32.mrf.mxu0
    %v1636 = vadd.f32 0.0, %v1635
    %v1637 = vpop.f32.mrf.mxu0
    %1638 = vdwg.mxu0
    %v1639 = vsel %vm1216, %v1613, -inf
    %1640 = vmax.xlane.f32.xlu0 %v1639
    %v1641 = vpop.xlane.xlu0 %1640
    %v1642 = vsel %vm1216, %v1636, -inf
    %1643 = vmax.xlane.f32.xlu0 %v1642
    %v1644 = vpop.xlane.xlu0 %1643
    %v1645 = vsub.f32 %v1613, %v1641
    %v1646 = vsub.f32 %v1636, %v1644
    %v1647 = vmul.f32 %v1645, 1.442695
    %v1648 = vpow.pop %v1647
    %v1649 = vmul.f32 %v1646, 1.442695
    %v1650 = vpow.pop %v1649
    %v1651 = vsel %vm1216, %v1648, 0.0
    %1652 = vadd.xlane.f32.xlu0 %v1651
    %v1653 = vpop.xlane.xlu0 %1652
    %v1654 = vsel %vm1216, %v1650, 0.0
    %1655 = vadd.xlane.f32.xlu0 %v1654
    %v1656 = vpop.xlane.xlu0 %1655
    %v1657 = vrcp.pop %v1653
    %v1658 = vrcp.pop %v1656
    %v1659 = vmul.f32 %v1653, %v1657
    %v1660 = vmul.f32 %v1656, %v1658
    %v1661 = vsub.f32 2.0, %v1659
    %v1662 = vsub.f32 2.0, %v1660
    %v1663 = vmul.f32 %v1657, %v1661
    %v1664 = vmul.f32 %v1658, %v1662
    %v1665 = vmul.f32 %v1648, %v1663
    %v1666 = vmul.f32 %v1650, %v1664
    %v1667 = vpack.c.bf16 %v1665, %v1665
    %v1668 = vpack.c.bf16 %v1666, %v1666
    %1669 = vrot.lane.b32.xlu0 %v1251, 104
    %v1670 = vpop.permute.xlu0 %1669
    %v1673 = vsel %vm1216, %v1667, 0
    %1675 = vmatpush.bf16.msra.mxu0 0
    %1676 = vmatpush.bf16.msra.mxu0 0
    %1677 = vmatpush.bf16.msra.mxu0 0
    %1678 = vmatpush.bf16.msra.mxu0 0
    %1679 = vmatpush.bf16.msra.mxu0 0
    %1680 = vmatpush.bf16.msra.mxu0 0
    %1681 = vmatpush.bf16.msra.mxu0 0
    %1682 = vmatpush.bf16.msra.mxu0 %v1670
    %1683 = vmatmul.bf16.gmra.mxu0 %v1673
    %v1684 = vpop.f32.mrf.mxu0
    %v1685 = vadd.f32 0.0, %v1684
    %v1686 = vpop.f32.mrf.mxu0
    %1687 = vdwg.mxu0
    %1688 = vrot.lane.b32.xlu0 %v1273, 104
    %v1689 = vpop.permute.xlu0 %1688
    %v1692 = vsel %vm1216, %v1668, 0
    %1694 = vmatpush.bf16.msra.mxu0 0
    %1695 = vmatpush.bf16.msra.mxu0 0
    %1696 = vmatpush.bf16.msra.mxu0 0
    %1697 = vmatpush.bf16.msra.mxu0 0
    %1698 = vmatpush.bf16.msra.mxu0 0
    %1699 = vmatpush.bf16.msra.mxu0 0
    %1700 = vmatpush.bf16.msra.mxu0 0
    %1701 = vmatpush.bf16.msra.mxu0 %v1689
    %1702 = vmatmul.bf16.gmra.mxu0 %v1692
    %v1703 = vpop.f32.mrf.mxu0
    %v1704 = vadd.f32 0.0, %v1703
    %v1705 = vpop.f32.mrf.mxu0
    %1706 = vdwg.mxu0
    %v1707 = vpack.c.bf16 %v1704, %v1685
    %v1708 = vld [vmem:[#allocation17 + $0xc] sm:$0xf]
    %v1710 = vsel %vm395, %v1707, 0
    %v1713 = vsel %vm472, %v1708, 0
    %1715 = vmatpush.bf16.msra.mxu0 0
    %1716 = vmatpush.bf16.msra.mxu0 0
    %1717 = vmatpush.bf16.msra.mxu0 0
    %1718 = vmatpush.bf16.msra.mxu0 0
    %1719 = vmatpush.bf16.msra.mxu0 0
    %1720 = vmatpush.bf16.msra.mxu0 0
    %1721 = vmatpush.bf16.msra.mxu0 0
    %1722 = vmatpush.bf16.msra.mxu0 %v1713
    %1723 = vmatmul.bf16.gmra.mxu0 %v1710
    %v1724 = vpop.f32.mrf.mxu0
    %v1725 = vadd.f32 0.0, %v1724
    %v1726 = vpop.f32.mrf.mxu0
    %v1727 = vadd.f32 0.0, %v1726
    %1728 = vdwg.mxu0
    %v1729 = vadd.f32 %v1591, %v1725
    %v1730 = vadd.f32 %v1592, %v1727
    %v1731 = vperm.slane %v1155, 0
    %v1732 = vadd.f32 %v1729, %v1731
    %v1733 = vadd.f32 %v1730, %v1731
    %v1734 = vadd.f32 %v969, %v1732
    %v1735 = vadd.f32 %v970, %v1733
    %v1736 = vld [vmem:[#allocation5 + $0x4] sm:$0x1]
    %v1737 = vld [vmem:[#allocation5 + $0x5] sm:$0x1]
    %v1738 = vsel %vm239, %v1734, 0.0
    %1739 = vadd.xlane.f32.xlu0 %v1738
    %v1740 = vpop.xlane.xlu0 %1739
    %v1741 = vsel %vm239, %v1735, 0.0
    %1742 = vadd.xlane.f32.xlu0 %v1741
    %v1743 = vpop.xlane.xlu0 %1742
    %v1744 = vmul.f32 %v1740, %v252
    %v1745 = vmul.f32 %v1743, %v252
    %v1746 = vsub.f32 %v1734, %v1744
    %v1747 = vsub.f32 %v1735, %v1745
    %v1748 = vmul.f32 %v1746, %v1746
    %v1749 = vmul.f32 %v1747, %v1747
    %v1750 = vsel %vm239, %v1748, 0.0
    %1751 = vadd.xlane.f32.xlu0 %v1750
    %v1752 = vpop.xlane.xlu0 %1751
    %v1753 = vsel %vm239, %v1749, 0.0
    %1754 = vadd.xlane.f32.xlu0 %v1753
    %v1755 = vpop.xlane.xlu0 %1754
    %v1756 = vmul.f32 %v1752, %v252
    %v1757 = vmul.f32 %v1755, %v252
    %v1758 = vadd.f32 %v1756, 1e-05
    %v1759 = vadd.f32 %v1757, 1e-05
    %v1760 = vrsqrt.pop %v1758
    %v1761 = vmul.f32 %v1760, %v1758
    %v1762 = vmul.f32 %v1761, %v1760
    %v1763 = vmul.f32 0.5, %v1762
    %v1764 = vsub.f32 1.5, %v1763
    %v1765 = vmul.f32 %v1760, %v1764
    %vm1766 = vweird.f32 %v1758
    %vm1767 = vweird.f32 %v1760
    %vm1768 = vmor %vm1766, %vm1767
    %v1769 = vsel %vm1768, %v1760, %v1765
    %v1770 = vrsqrt.pop %v1759
    %v1771 = vmul.f32 %v1770, %v1759
    %v1772 = vmul.f32 %v1771, %v1770
    %v1773 = vmul.f32 0.5, %v1772
    %v1774 = vsub.f32 1.5, %v1773
    %v1775 = vmul.f32 %v1770, %v1774
    %vm1776 = vweird.f32 %v1759
    %vm1777 = vweird.f32 %v1770
    %vm1778 = vmor %vm1776, %vm1777
    %v1779 = vsel %vm1778, %v1770, %v1775
    %v1780 = vmul.f32 %v1746, %v1769
    %v1781 = vmul.f32 %v1747, %v1779
    %v1782 = vperm.slane %v1736, 0
    %v1783 = vmul.f32 %v1780, %v1782
    %v1784 = vmul.f32 %v1781, %v1782
    %v1785 = vperm.slane %v1737, 0
    %v1786 = vadd.f32 %v1783, %v1785
    %v1787 = vadd.f32 %v1784, %v1785
    %v1788 = vpack.c.bf16 %v1787, %v1786
    %v1789 = vld [vmem:[#allocation19] sm:$0xf]
    %v1790 = vld [vmem:[#allocation19 + $0x4] sm:$0xf]
    %v1791 = vld [vmem:[#allocation19 + $0x8] sm:$0xf]
    %v1792 = vld [vmem:[#allocation19 + $0xc] sm:$0xf]
    %v1793 = vld [vmem:[%s14] sm:$0x1]
    %v1795 = vperm.slane %v1793, 0
    %v1801 = vunpack.c.l.b16 %v1789
    %v1802 = vunpack.c.l.b16 %v1790
    %v1803 = vunpack.c.l.b16 %v1791
    %v1804 = vunpack.c.l.b16 %v1792
    %v1805 = vpack.c.b16 %v1802, %v1801
    %v1806 = vpack.c.b16 %v1804, %v1803
    %v1810 = vsel %vm239, %v1788, 0
    %1812 = vmatpush.bf16.msra.mxu0 0
    %1813 = vmatpush.bf16.msra.mxu0 0
    %1814 = vmatpush.bf16.msra.mxu0 0
    %1815 = vmatpush.bf16.msra.mxu0 0
    %1816 = vmatpush.bf16.msra.mxu0 0
    %1817 = vmatpush.bf16.msra.mxu0 0
    %1818 = vmatpush.bf16.msra.mxu0 %v1806
    %1819 = vmatpush.bf16.msra.mxu0 %v1805
    %1820 = vmatmul.bf16.gmra.mxu0 %v1810
    %v1821 = vpop.f32.mrf.mxu0
    %v1822 = vadd.f32 %v1795, %v1821
    %v1823 = vpop.f32.mrf.mxu0
    %v1824 = vadd.f32 %v1795, %v1823
    %1825 = vdwg.mxu0
    %vm1826 = vcmp.ge.f32.partialorder %v1822, 0.0
    %vm1827 = vcmp.ge.f32.partialorder %v1824, 0.0
    %v1828 = vmul.f32 %v1822, 0.01
    %v1829 = vmul.f32 %v1824, 0.01
    %v1830 = vsel %vm1826, %v1822, %v1828
    %v1831 = vsel %vm1827, %v1824, %v1829
    %v1832 = vpack.c.bf16 %v1831, %v1830
    %v1833 = vld [vmem:[%s15] sm:$0xf]
    %v1834 = vld [vmem:[%s15 + $0x4] sm:$0xf]
    %v1835 = vld [vmem:[%s15 + $0x8] sm:$0xf]
    %v1836 = vld [vmem:[%s15 + $0xc] sm:$0xf]
    %v1837 = vld [vmem:[%s15 + $0x10] sm:$0xf]
    %v1838 = vld [vmem:[%s15 + $0x14] sm:$0xf]
    %v1839 = vld [vmem:[%s15 + $0x18] sm:$0xf]
    %v1840 = vld [vmem:[%s15 + $0x1c] sm:$0xf]
    %v1841 = vld [vmem:[%s15 + $0x20] sm:$0xf]
    %v1842 = vld [vmem:[%s15 + $0x24] sm:$0xf]
    %v1843 = vld [vmem:[%s15 + $0x28] sm:$0xf]
    %v1844 = vld [vmem:[%s15 + $0x2c] sm:$0xf]
    %v1845 = vld [vmem:[%s15 + $0x30] sm:$0xf]
    %v1846 = vld [vmem:[%s15 + $0x34] sm:$0xf]
    %v1847 = vld [vmem:[%s15 + $0x38] sm:$0xf]
    %v1848 = vld [vmem:[%s15 + $0x3c] sm:$0xf]
    %v1865 = vunpack.c.l.b16 %v1833
    %v1866 = vunpack.c.l.b16 %v1834
    %v1867 = vunpack.c.l.b16 %v1835
    %v1868 = vunpack.c.l.b16 %v1836
    %v1869 = vunpack.c.l.b16 %v1837
    %v1870 = vunpack.c.l.b16 %v1838
    %v1871 = vunpack.c.l.b16 %v1839
    %v1872 = vunpack.c.l.b16 %v1840
    %v1873 = vunpack.c.l.b16 %v1841
    %v1874 = vunpack.c.l.b16 %v1842
    %v1875 = vunpack.c.l.b16 %v1843
    %v1876 = vunpack.c.l.b16 %v1844
    %v1877 = vunpack.c.l.b16 %v1845
    %v1878 = vunpack.c.l.b16 %v1846
    %v1879 = vunpack.c.l.b16 %v1847
    %v1880 = vunpack.c.l.b16 %v1848
    %v1881 = vpack.c.b16 %v1866, %v1865
    %v1882 = vpack.c.b16 %v1868, %v1867
    %v1883 = vpack.c.b16 %v1870, %v1869
    %v1884 = vpack.c.b16 %v1872, %v1871
    %v1885 = vpack.c.b16 %v1874, %v1873
    %v1886 = vpack.c.b16 %v1876, %v1875
    %v1887 = vpack.c.b16 %v1878, %v1877
    %v1888 = vpack.c.b16 %v1880, %v1879
    %1897 = vmatpush.bf16.msra.mxu0 %v1888
    %1898 = vmatpush.bf16.msra.mxu0 %v1887
    %1899 = vmatpush.bf16.msra.mxu0 %v1886
    %1900 = vmatpush.bf16.msra.mxu0 %v1885
    %1901 = vmatpush.bf16.msra.mxu0 %v1884
    %1902 = vmatpush.bf16.msra.mxu0 %v1883
    %1903 = vmatpush.bf16.msra.mxu0 %v1882
    %1904 = vmatpush.bf16.msra.mxu0 %v1881
    %1905 = vmatmul.bf16.gmra.mxu0 %v1832
    %v1906 = vpop.f32.mrf.mxu0
    %v1907 = vadd.f32 0.0, %v1906
    %v1908 = vpop.f32.mrf.mxu0
    %v1909 = vadd.f32 0.0, %v1908
    %1910 = vdwg.mxu0
    %v1911 = vadd.f32 %v1734, %v1907
    %v1912 = vadd.f32 %v1735, %v1909
    %v1913 = vld [vmem:[%s16] sm:$0x1]
    %v1915 = vperm.slane %v1913, 0
    %v1917 = vadd.f32 %v1911, %v1915
    %v1918 = vadd.f32 %v1912, %v1915
    %1919 = vst.msk [vmem:[#allocation20] sm:$0xff] %vm239, %v1917
    %1920 = vst.msk [vmem:[#allocation20 + $0x8] sm:$0xff] %vm239, %v1918
    // Predicated region
    $region114: #{tpu_custom_call.1} parent=1 // pred_check
      _
    $region115: #{tpu_custom_call.1} parent=1 // pred_check_branch
      %1922 = sbr.rel (0) target = $region117
    $region116: #{tpu_custom_call.1} parent=1 // pred_region
      %1924 = vsyncadd [#allocation4], 0
      %s1925 = sshll.u32 [#allocation20], 4
      %s1926 = int_to_ptr.vmem [resolvable:$true] %s1925
      %s1927 = sshll.u32 %s17, 4
      %s1928 = int_to_ptr.hbm [resolvable:$true] %s1927
      %1933 = dma.vmem_to_hbm [thread:$0]  %s1926, 256, %s1928, [#allocation4], 128, 128, 8
    $region117: #{tpu_custom_call.1} parent=1 // pred_fallthru
      _
    // Predicated region
    $region118: #{tpu_custom_call.1} parent=1 // pred_check
      _
    $region119: #{tpu_custom_call.1} parent=1 // pred_check_branch
      %1935 = sbr.rel (0) target = $region121
    $region120: #{tpu_custom_call.1} parent=1 // pred_region
      %1937 = dma.done [#allocation4], 256
    $region121: #{tpu_custom_call.1} parent=1 // pred_fallthru
      _
    %1938 = vsyncpa [#allocation3], 1
    %1939 = vsyncpa [#allocation6], 1
    %1940 = vsyncpa [#allocation9], 1
    %1941 = vsyncpa [#allocation12], 1
    %1942 = vsyncpa [#allocation15], 1
    %1943 = vsyncpa [#allocation18], 1
    %1944 = vsyncpa [#allocation4], 1

</llo_original>
